<compile_context>
chip_gen: v7x
topology: tpu7x:2x2x1
jax: 0.10.0
libtpu: 0.0.40
codegen_flags: <defaults>
</compile_context>

<pallas_src>
import functools

import jax
import jax.numpy as jnp
from jax.experimental import pallas as pl
from jax.experimental.pallas import tpu as pltpu


def _round_up(x: int, m: int) -> int:
    return (x + m - 1) // m * m


_VMEM_CAP = None


def _vmem_cap_bytes() -> int:
    """Per-core VMEM capacity (generation-aware, with a safe fallback)."""
    global _VMEM_CAP
    if _VMEM_CAP is None:
        try:
            _VMEM_CAP = int(pltpu.get_tpu_info().vmem_capacity_bytes)
        except Exception:
            _VMEM_CAP = 64 * 1024 * 1024  # conservative: v7x has 64 MiB / TC
    return _VMEM_CAP


def _vmem_limit(footprint: int, budget: int) -> int:
    return int(min(budget, max(2 * footprint, 32 * 1024 * 1024)))


def _divisor_tiles(d_pad: int, cap: int):
    """Multiples of 128 that divide d_pad, descending, capped at `cap`."""
    start = min(d_pad, cap)
    return [c for c in range(start, 0, -128) if d_pad % c == 0]


def _pick_small_tn(n_pad, d_pad, itemsize, budget):
    """Largest weight column block (d_pad, tn) that fits VMEM, preferring
    >= 2 grid blocks so both v7x TensorCores get work."""
    fitting = []
    for tn in _divisor_tiles(d_pad, 2048):
        foot = 2 * (n_pad * d_pad + d_pad * tn + n_pad * tn) * itemsize
        if foot <= budget:
            fitting.append((tn, foot))
    if not fitting:
        return None
    multi = [(t, f) for (t, f) in fitting if d_pad // t >= 2]
    return multi[0] if multi else fitting[0]


def _pick_large_tiles(n, d_pad, itemsize, budget):
    """(tm, tn, tk, x_resident, footprint) for the tiled (I, J, K) path."""
    tm = 512 if n >= 1024 else 256
    tn = _divisor_tiles(d_pad, 512)[0]  # largest divisor of d_pad <= 512
    acc_bytes = tm * tn * 4             # conservative (counted even if unused)
    for x_res in (True, False):
        for tk in _divisor_tiles(d_pad, min(d_pad, 2048)):
            x_elems = tm * d_pad if x_res else tm * tk
            foot = 2 * (x_elems + tk * tn + tm * tn) * itemsize + acc_bytes
            if foot <= budget:
                return tm, tn, tk, x_res, foot
    # Pathological fallback (absurdly large feat_dim): minimal tiles.
    tm, tn, tk = 128, 128, 128
    foot = 2 * (tm * tk + tk * tn + tm * tn) * itemsize + tm * tn * 4
    return tm, tn, tk, False, foot


# --------------------------------------------------------------------------
# Kernels
# --------------------------------------------------------------------------
def pa_kernel_small(x_ref, w_ref, o_ref):
    # x_ref: (n_pad, d_pad) resident; w_ref: (d_pad, tn); o_ref: (n_pad, tn).
    # One canonical MXU dot per grid step; no K loop, no accumulator passes.
    o_ref[...] = jnp.dot(
        x_ref[...], w_ref[...], preferred_element_type=jnp.float32
    ).astype(o_ref.dtype)


def pa_kernel_tiled(x_ref, w_ref, o_ref, *scratch):
    # x_ref: (tm, d_pad) resident slab  OR  (tm, tk) streamed block.
    # w_ref: (tk, tn);  o_ref: (tm, tn) (VMEM-resident across the K axis).
    k = pl.program_id(2)
    tk = w_ref.shape[0]
    if x_ref.shape[1] == tk:
        x_blk = x_ref[...]
    else:
        x_blk = x_ref[:, pl.ds(pl.multiple_of(k * tk, 128), tk)]
    part = jnp.dot(x_blk, w_ref[...], preferred_element_type=jnp.float32)

    acc = scratch[0] if scratch else o_ref  # f32 output accumulates in place

    @pl.when(k == 0)
    def _():
        acc[...] = part.astype(acc.dtype)

    @pl.when(k > 0)
    def _():
        acc[...] += part.astype(acc.dtype)

    if scratch:  # sub-f32 output: cast once at the final K step
        @pl.when(k == pl.num_programs(2) - 1)
        def _():
            o_ref[...] = scratch[0][...].astype(o_ref.dtype)


# --------------------------------------------------------------------------
# One-time parameter preparation (outside the per-call forward path)
# --------------------------------------------------------------------------
def prepare_pa_weight(weight):
    """Pad the conv-style (out, in) weight to a 128 multiple and transpose it
    to (in, out) ONCE.  Never do this per forward call."""
    d_out, d_in = weight.shape
    assert d_out == d_in, "pa weight must be square (feat_dim, feat_dim)"
    d_pad = _round_up(d_in, 128)
    if d_pad != d_in:
        weight = jnp.pad(weight, ((0, d_pad - d_in), (0, d_pad - d_in)))
    return jnp.transpose(weight)  # executed eagerly -> concrete (K, O) array


# --------------------------------------------------------------------------
# Forward
# --------------------------------------------------------------------------
@jax.jit
def pa_forward(x, weight_t):
    """JAX/Pallas equivalent of pa.forward.

    x: (N, feat_dim) or (N, C, H, W) with C*H*W == feat_dim.
    weight_t: prepare_pa_weight(weight) -> (d_pad, d_pad), (in, out) layout.
    Returns (N, feat_dim) = x @ weight.T
    """
    if x.ndim != 2:
        x = x.reshape(x.shape[0], -1)  # flatten(1); plain-JAX glue
    n, d = x.shape
    d_pad = weight_t.shape[0]
    assert weight_t.shape == (d_pad, d_pad) and d_pad == _round_up(d, 128), (
        "weight must be prepared once with prepare_pa_weight()"
    )

    out_dtype = x.dtype
    itemsize = max(jnp.dtype(x.dtype).itemsize, jnp.dtype(weight_t.dtype).itemsize)
    sublane = max(8, 32 // jnp.dtype(x.dtype).itemsize)  # dtype-aware packing
    budget = (3 * _vmem_cap_bytes()) // 4                 # ~75% of per-core VMEM

    # ---------------- small-batch path: collapsed K ----------------------
    small = None
    if n <= 256:
        n_pad_s = _round_up(n, sublane)
        small = _pick_small_tn(n_pad_s, d_pad, itemsize, budget)

    if small is not None:
        tn, foot = small
        n_pad = n_pad_s
        xp = x if (n_pad, d_pad) == (n, d) else jnp.pad(
            x, ((0, n_pad - n), (0, d_pad - d)))
        out = pl.pallas_call(
            pa_kernel_small,
            out_shape=jax.ShapeDtypeStruct((n_pad, d_pad), out_dtype),
            grid_spec=pltpu.PrefetchScalarGridSpec(
                num_scalar_prefetch=0,
                grid=(d_pad // tn,),
                in_specs=[
                    pl.BlockSpec((n_pad, d_pad), lambda j: (0, 0)),  # x resident
                    pl.BlockSpec((d_pad, tn), lambda j: (0, j)),     # W.T cols
                ],
                out_specs=pl.BlockSpec((n_pad, tn), lambda j: (0, j)),
            ),
            compiler_params=pltpu.CompilerParams(
                dimension_semantics=("parallel",),
                vmem_limit_bytes=_vmem_limit(foot, budget),
            ),
        )(xp, weight_t)
        return out[:n, :d]

    # ---------------- large-batch path: tiled (I, J, K) ------------------
    tm, tn, tk, x_res, foot = _pick_large_tiles(n, d_pad, itemsize, budget)
    n_pad = _round_up(n, tm)
    xp = x if (n_pad, d_pad) == (n, d) else jnp.pad(
        x, ((0, n_pad - n), (0, d_pad - d)))

    if x_res:
        # x row-slab resident across the whole j/k sweep: read from HBM once.
        x_spec = pl.BlockSpec((tm, d_pad), lambda i, j, k: (i, 0))
    else:
        x_spec = pl.BlockSpec((tm, tk), lambda i, j, k: (i, k))

    scratch = [] if out_dtype == jnp.float32 else [pltpu.VMEM((tm, tn), jnp.float32)]

    out = pl.pallas_call(
        pa_kernel_tiled,
        out_shape=jax.ShapeDtypeStruct((n_pad, d_pad), out_dtype),
        grid_spec=pltpu.PrefetchScalarGridSpec(
            num_scalar_prefetch=0,
            grid=(n_pad // tm, d_pad // tn, d_pad // tk),
            in_specs=[
                x_spec,
                pl.BlockSpec((tk, tn), lambda i, j, k: (k, j)),  # W.T block
            ],
            out_specs=pl.BlockSpec((tm, tn), lambda i, j, k: (i, j)),
            scratch_shapes=scratch,
        ),
        compiler_params=pltpu.CompilerParams(
            dimension_semantics=("parallel", "parallel", "arbitrary"),
            vmem_limit_bytes=_vmem_limit(foot, budget),
        ),
    )(xp, weight_t)
    return out[:n, :d]


if __name__ == "__main__":
    # Small shapes consistent with the module: x (N, C, H, W) flattened to
    # feat_dim = C*H*W; weight is (feat_dim, feat_dim).
    batch, C, H, W = 2, 4, 16, 16
    feat_dim = C * H * W  # 1024

    key = jax.random.PRNGKey(0)
    kx, kw = jax.random.split(key)
    x = jax.random.normal(kx, (batch, C, H, W), dtype=jnp.float32)

    # Module init value: nn.Parameter(torch.ones(D, D)).
    weight_ones = jnp.ones((feat_dim, feat_dim), dtype=jnp.float32)
    # Also check with a non-trivial (trained-like) weight to catch layout bugs.
    weight_rand = jax.random.normal(kw, (feat_dim, feat_dim), dtype=jnp.float32)

    x2d = x.reshape(batch, -1)
    for wgt in (weight_ones, weight_rand):
        w_t = prepare_pa_weight(wgt)  # one-time prep, outside the forward path
        y = jax.block_until_ready(pa_forward(x, w_t))
        y_ref = x2d @ wgt.T
        assert y.shape == (batch, feat_dim)
        assert jnp.allclose(y, y_ref, atol=1e-3, rtol=1e-3), "mismatch vs reference"

    # Also exercise the already-2D input path.
    w_t = prepare_pa_weight(weight_rand)
    y2 = jax.block_until_ready(pa_forward(x2d, w_t))
    assert jnp.allclose(y2, x2d @ weight_rand.T, atol=1e-3, rtol=1e-3)

    # TODO(synk): self.layer_norm is declared in __init__ but unused in
    # forward; intentionally not implemented.
    print("KERNEL_OK")
</pallas_src>

<mosaic_0001>
module attributes {stable_mosaic.version = 11 : i64} {
  func.func @pa_kernel_small(%arg0: i32, %arg1: memref<8x1024xf32, #tpu.memory_space<vmem>>, %arg2: memref<1024x512xf32, #tpu.memory_space<vmem>>, %arg3: memref<8x512xf32, #tpu.memory_space<vmem>>) attributes {dimension_semantics = [#tpu.dimension_semantics<parallel>], iteration_bounds = array<i64: 2>, scalar_prefetch = 0 : i64, scratch_operands = 0 : i64, tpu.core_type = #tpu.core_type<tc>, window_params = [{pipeline_mode = #tpu.pipeline_mode<synchronous>, transform_indices = @transform_0, window_bounds = array<i64: 8, 1024>}, {transform_indices = @transform_1, window_bounds = array<i64: 1024, 512>}, {transform_indices = @transform_2, window_bounds = array<i64: 8, 512>}]} {
    %c0 = arith.constant 0 : index
    %c0_0 = arith.constant 0 : index
    %0 = vector.load %arg1[%c0, %c0_0] : memref<8x1024xf32, #tpu.memory_space<vmem>>, vector<8x1024xf32>
    %c0_1 = arith.constant 0 : index
    %c0_2 = arith.constant 0 : index
    %1 = vector.load %arg2[%c0_1, %c0_2] : memref<1024x512xf32, #tpu.memory_space<vmem>>, vector<1024x512xf32>
    %cst = arith.constant dense<0.000000e+00> : vector<8x512xf32>
    %2 = tpu.matmul %0, %1, %cst {dimension_numbers = #tpu.dot_dimension_numbers<[1], [0], [0], [1], [0, 0, 1, 1], [], []>} : vector<8x1024xf32>, vector<1024x512xf32>, vector<8x512xf32> -> vector<8x512xf32>
    %c0_3 = arith.constant 0 : index
    %c0_4 = arith.constant 0 : index
    %3 = vector.load %arg3[%c0_3, %c0_4] : memref<8x512xf32, #tpu.memory_space<vmem>>, vector<8x512xf32>
    tpu.vector_store %arg3[%c0_3, %c0_4], %2 {strides = array<i32>} : memref<8x512xf32, #tpu.memory_space<vmem>>, vector<8x512xf32>,
    return
  }
  func.func @transform_0(%arg0: i32) -> (i32, i32) {
    %c0_i32 = arith.constant 0 : i32
    %c0_i32_0 = arith.constant 0 : i32
    %c0_i32_1 = arith.constant 0 : i32
    return %c0_i32, %c0_i32_0 : i32, i32
  }
  func.func @transform_1(%arg0: i32) -> (i32, i32) {
    %c0_i32 = arith.constant 0 : i32
    %c0_i32_0 = arith.constant 0 : i32
    return %c0_i32, %arg0 : i32, i32
  }
  func.func @transform_2(%arg0: i32) -> (i32, i32) {
    %c0_i32 = arith.constant 0 : i32
    %c0_i32_0 = arith.constant 0 : i32
    return %c0_i32, %arg0 : i32, i32
  }
}

</mosaic_0001>

<llo_original>
// kernel: pa_forward.1
$region0: #{pa_forward.1}
  #allocation0 [shape = 'u32[]', space=smem, size = 0x4, offset = 0x4, fixed_abs, tag = 'smem constant byte address 0x4 - core index']
  #allocation1 [shape = 'u32[144,128]{1,0:T(1,128)}', space=vmem, size = 0x12000, scoped, tag = 'internal scratch']
  %s0 = inlined_call_operand.vmem [shape: f32[8,1024], index: 0, kind: input, shape index: {}]
  %s1 = inlined_call_operand.hbm [shape: f32[1024,1024], index: 1, kind: input, shape index: {}]
  %s2 = inlined_call_operand.vmem [shape: f32[8,1024], index: 2, kind: output, shape index: {}]
  %s3 = sld [smem:[#allocation0]]
  $region45: #{pa_forward.1} parent=0
    _
  %s5 = ssub.s32 1, %s3
  %s6 = scalar_select 0, %s5, %s3
  $region1: #{pa_forward.1} parent=0
    #allocation2 [shape = 'u8[4194304]{0}', space=vmem, size = 0x400000, scoped, tag = 'input window, operand 1']
    #allocation3 [shape = 's32[2]{0}', space=sflag, size = 0x8, scoped, tag = 'scoped memory for pa_forward.1']
    %7 = vsyncpa [#allocation3], 0
    %s8 = scalar_lea.sflag [#allocation3], 1
    %9 = vsyncpa %s8, 0
    loop: start=0, step=1, limit=4
    $region2: #{pa_forward.1} parent=1 // loop_pre_header
      _
    $region3: #{pa_forward.1} parent=1 // loop_header
      %s11 = sphi 0, %s15
      %p12 = scmp.ge.s32.totalorder %s11, 4
      %s19 = sphi 0, %s19
      %s21 = sphi 0, %s19
      %s22 = sphi 0, %s21
      %s36 = sphi 0, %s22
      %s42 = sphi 0, %s44
      %s45 = sphi 0, %s42
      %s46 = sphi 0, %s45
      %s62 = sphi 0, %s46
      %s68 = sphi 0, %s70
      %s71 = sphi 0, %s68
      %s72 = sphi 0, %s71
      %s88 = sphi 0, %s72
    $region4: #{pa_forward.1} parent=1 // loop_header_branch
      %14 = sbr.rel (%p12) target = $region8
    $region5: #{pa_forward.1} parent=1 // loop_body
      %s16 = ssub.s32 %s11, 1
      %s17 = ssub.s32 %s11, 2
      %s18 = sadd.s32 %s11, 1
      %s20 = sadd.s32 %s19, 1
      %p23 = scmp.eq.s32.totalorder %s11, 1
      %p24 = scmp.ne.s32.totalorder %s19, %s21
      %p25 = scmp.eq.s32.totalorder %s11, 0
      %p26 = por %p24, %p25
      %p27 = scmp.ne.s32.totalorder %s19, %s21
      %p28 = scmp.eq.s32.totalorder %s16, 1
      %p29 = por %p27, %p28
      %p30 = scmp.ne.s32.totalorder %s21, %s22
      %p31 = scmp.eq.s32.totalorder %s16, 0
      %p32 = por %p30, %p31
      %p33 = scmp.ne.s32.totalorder %s21, %s22
      %p34 = scmp.eq.s32.totalorder %s17, 1
      %p35 = por %p33, %p34
      %p37 = scmp.ne.s32.totalorder %s22, %s36
      %p38 = scmp.eq.s32.totalorder %s17, 0
      %p39 = por %p37, %p38
      %s40 = ssub.s32 %s11, %s18
      %p41 = scmp.eq.s32.totalorder %s40, 0
      %s43 = sadd.s32 %s42, 1
      %s44 = scalar_select %p41, %s42, %s43
      %p47 = pneg %p41
      %p48 = scmp.eq.s32.totalorder %s11, 1
      %p49 = por %p47, %p48
      %p50 = scmp.ne.s32.totalorder %s42, %s45
      %p51 = scmp.eq.s32.totalorder %s11, 0
      %p52 = por %p50, %p51
      %p53 = scmp.ne.s32.totalorder %s42, %s45
      %p54 = scmp.eq.s32.totalorder %s16, 1
      %p55 = por %p53, %p54
      %p56 = scmp.ne.s32.totalorder %s45, %s46
      %p57 = scmp.eq.s32.totalorder %s16, 0
      %p58 = por %p56, %p57
      %p59 = scmp.ne.s32.totalorder %s45, %s46
      %p60 = scmp.eq.s32.totalorder %s17, 1
      %p61 = por %p59, %p60
      %p63 = scmp.ne.s32.totalorder %s46, %s62
      %p64 = scmp.eq.s32.totalorder %s17, 0
      %p65 = por %p63, %p64
      %s66 = ssub.s32 %s11, %s18
      %p67 = scmp.eq.s32.totalorder %s66, 0
      %s69 = sadd.s32 %s68, 1
      %s70 = scalar_select %p67, %s68, %s69
      %p73 = pneg %p67
      %p74 = scmp.eq.s32.totalorder %s11, 1
      %p75 = por %p73, %p74
      %p76 = scmp.ne.s32.totalorder %s68, %s71
      %p77 = scmp.eq.s32.totalorder %s11, 0
      %p78 = por %p76, %p77
      %p79 = scmp.ne.s32.totalorder %s68, %s71
      %p80 = scmp.eq.s32.totalorder %s16, 1
      %p81 = por %p79, %p80
      %p82 = scmp.ne.s32.totalorder %s71, %s72
      %p83 = scmp.eq.s32.totalorder %s16, 0
      %p84 = por %p82, %p83
      %p85 = scmp.ne.s32.totalorder %s71, %s72
      %p86 = scmp.eq.s32.totalorder %s17, 1
      %p87 = por %p85, %p86
      %p89 = scmp.ne.s32.totalorder %s72, %s88
      %p90 = scmp.eq.s32.totalorder %s17, 0
      %p91 = por %p89, %p90
      %p92 = scmp.le.s32.totalorder 1, %s11
      %p93 = scmp.lt.s32.totalorder %s11, 3
      %p94 = pnand %p92, %p93
      %p95 = pneg %p94
      // Predicated region
      $region9: #{pa_forward.1} parent=5 // pred_check
        _
      $region10: #{pa_forward.1} parent=5 // pred_check_branch
        %97 = sbr.rel (%p94) target = $region12
      $region11: #{pa_forward.1} parent=5 // pred_region
        %s98 = ssub.s32 %s11, 1
        // Predicated region
        $region13: #{pa_forward.1} parent=11 // pred_check
          %p99 = pneg %p32
        $region14: #{pa_forward.1} parent=11 // pred_check_branch
          %101 = sbr.rel (%p99) target = $region16
        $region15: #{pa_forward.1} parent=11 // pred_region
          _
        $region16: #{pa_forward.1} parent=11 // pred_fallthru
          _
      $region12: #{pa_forward.1} parent=5 // pred_fallthru
        _
      %p102 = scmp.lt.s32.totalorder %s11, 2
      // Predicated region
      $region17: #{pa_forward.1} parent=5 // pred_check
        %p103 = pneg %p102
      $region18: #{pa_forward.1} parent=5 // pred_check_branch
        %105 = sbr.rel (%p103) target = $region20
      $region19: #{pa_forward.1} parent=5 // pred_region
        // Predicated region
        $region21: #{pa_forward.1} parent=19 // pred_check
          %p106 = pneg %p52
        $region22: #{pa_forward.1} parent=19 // pred_check_branch
          %108 = sbr.rel (%p106) target = $region24
        $region23: #{pa_forward.1} parent=19 // pred_region
          %s109 = sand.u32 %s42, 1
          %s110 = scalar_lea.sflag [#allocation3], %s109
          %s111 = sand.u32 %s42, 1
          %s112 = smul.addr %s111, 4096
          %s113 = scalar_lea.vmem [#allocation2], %s112
          %s114 = smul.u32 4, %s11
          %s116 = ssub.s32 65536, 65536
          %117 = vsyncadd %s110, %s116
          %s118 = smul.addr %s114, 128
          %s119 = scalar_lea.hbm %s1, %s118
          %s120 = sshll.u32 %s113, 4
          %s121 = int_to_ptr.vmem [resolvable:$true] %s120
          %126 = dma.hbm_to_vmem [thread:$0]  %s119, 65536, %s121, %s110, 1024, 512, 32
        $region24: #{pa_forward.1} parent=19 // pred_fallthru
          _
      $region20: #{pa_forward.1} parent=5 // pred_fallthru
        _
      %p127 = scmp.le.s32.totalorder 1, %s11
      %p128 = scmp.lt.s32.totalorder %s11, 3
      %p129 = pnand %p127, %p128
      %p130 = pneg %p129
      // Predicated region
      $region25: #{pa_forward.1} parent=5 // pred_check
        _
      $region26: #{pa_forward.1} parent=5 // pred_check_branch
        %132 = sbr.rel (%p129) target = $region28
      $region27: #{pa_forward.1} parent=5 // pred_region
        %s133 = ssub.s32 %s11, 1
        %s134 = sand.u32 %s45, 1
        %s135 = scalar_lea.sflag [#allocation3], %s134
        %s136 = sand.u32 %s45, 1
        %s137 = smul.addr %s136, 4096
        %s138 = scalar_lea.vmem [#allocation2], %s137
        // Predicated region
        $region29: #{pa_forward.1} parent=27 // pred_check
          %p139 = pneg %p58
        $region30: #{pa_forward.1} parent=27 // pred_check_branch
          %141 = sbr.rel (%p139) target = $region32
        $region31: #{pa_forward.1} parent=27 // pred_region
          %142 = dma.done %s135, 65536
        $region32: #{pa_forward.1} parent=27 // pred_fallthru
          _
        %p143 = pneg %p32
        %p144 = pneg %p29
        %s145 = sand.u32 %s45, 1
        %s146 = scalar_lea.sflag [#allocation3], %s145
        %s147 = sand.u32 %s45, 1
        %s148 = smul.addr %s147, 4096
        %s149 = scalar_lea.vmem [#allocation2], %s148
        %p150 = pneg %p58
        %p151 = pneg %p55
        %p152 = pneg %p84
        %p153 = pneg %p81
        %s154 = smul.u32 4, %s16
        %p155 = scmp.lt.s32.totalorder %s154, 7
        %s156 = scalar_select %p155, %s154, 7
        %s157 = smul.addr %s156, 8
        %s158 = scalar_lea.vmem %s2, %s157
        %s159 = smul.u32 4, %s16
        %s160 = smul.u32 4, %s16
        %p161 = scmp.lt.s32.totalorder %s160, 7
        %s162 = scalar_select %p161, %s160, 7
        %s163 = smul.addr %s162, 8
        %s164 = scalar_lea.vmem %s2, %s163
        %s165 = smul.u32 4, %s16
        %v166 = vld [vmem:[%s0] sm:$0xff]
        %v167 = vld [vmem:[%s0 + $0x8] sm:$0xff]
        %v168 = vld [vmem:[%s0 + $0x10] sm:$0xff]
        %v169 = vld [vmem:[%s0 + $0x18] sm:$0xff]
        %v170 = vld [vmem:[%s0 + $0x20] sm:$0xff]
        %v171 = vld [vmem:[%s0 + $0x28] sm:$0xff]
        %v172 = vld [vmem:[%s0 + $0x30] sm:$0xff]
        %v173 = vld [vmem:[%s0 + $0x38] sm:$0xff]
        %v174 = vld [vmem:[%s138] sm:$0xff]
        %v175 = vld [vmem:[%s138 + $0x8] sm:$0xff]
        %v176 = vld [vmem:[%s138 + $0x10] sm:$0xff]
        %v177 = vld [vmem:[%s138 + $0x18] sm:$0xff]
        %v178 = vld [vmem:[%s138 + $0x20] sm:$0xff]
        %v179 = vld [vmem:[%s138 + $0x28] sm:$0xff]
        %v180 = vld [vmem:[%s138 + $0x30] sm:$0xff]
        %v181 = vld [vmem:[%s138 + $0x38] sm:$0xff]
        %v182 = vld [vmem:[%s138 + $0x40] sm:$0xff]
        %v183 = vld [vmem:[%s138 + $0x48] sm:$0xff]
        %v184 = vld [vmem:[%s138 + $0x50] sm:$0xff]
        %v185 = vld [vmem:[%s138 + $0x58] sm:$0xff]
        %v186 = vld [vmem:[%s138 + $0x60] sm:$0xff]
        %v187 = vld [vmem:[%s138 + $0x68] sm:$0xff]
        %v188 = vld [vmem:[%s138 + $0x70] sm:$0xff]
        %v189 = vld [vmem:[%s138 + $0x78] sm:$0xff]
        %v190 = vld [vmem:[%s138 + $0x80] sm:$0xff]
        %v191 = vld [vmem:[%s138 + $0x88] sm:$0xff]
        %v192 = vld [vmem:[%s138 + $0x90] sm:$0xff]
        %v193 = vld [vmem:[%s138 + $0x98] sm:$0xff]
        %v194 = vld [vmem:[%s138 + $0xa0] sm:$0xff]
        %v195 = vld [vmem:[%s138 + $0xa8] sm:$0xff]
        %v196 = vld [vmem:[%s138 + $0xb0] sm:$0xff]
        %v197 = vld [vmem:[%s138 + $0xb8] sm:$0xff]
        %v198 = vld [vmem:[%s138 + $0xc0] sm:$0xff]
        %v199 = vld [vmem:[%s138 + $0xc8] sm:$0xff]
        %v200 = vld [vmem:[%s138 + $0xd0] sm:$0xff]
        %v201 = vld [vmem:[%s138 + $0xd8] sm:$0xff]
        %v202 = vld [vmem:[%s138 + $0xe0] sm:$0xff]
        %v203 = vld [vmem:[%s138 + $0xe8] sm:$0xff]
        %v204 = vld [vmem:[%s138 + $0xf0] sm:$0xff]
        %v205 = vld [vmem:[%s138 + $0xf8] sm:$0xff]
        %v206 = vld [vmem:[%s138 + $0x100] sm:$0xff]
        %v207 = vld [vmem:[%s138 + $0x108] sm:$0xff]
        %v208 = vld [vmem:[%s138 + $0x110] sm:$0xff]
        %v209 = vld [vmem:[%s138 + $0x118] sm:$0xff]
        %v210 = vld [vmem:[%s138 + $0x120] sm:$0xff]
        %v211 = vld [vmem:[%s138 + $0x128] sm:$0xff]
        %v212 = vld [vmem:[%s138 + $0x130] sm:$0xff]
        %v213 = vld [vmem:[%s138 + $0x138] sm:$0xff]
        %v214 = vld [vmem:[%s138 + $0x140] sm:$0xff]
        %v215 = vld [vmem:[%s138 + $0x148] sm:$0xff]
        %v216 = vld [vmem:[%s138 + $0x150] sm:$0xff]
        %v217 = vld [vmem:[%s138 + $0x158] sm:$0xff]
        %v218 = vld [vmem:[%s138 + $0x160] sm:$0xff]
        %v219 = vld [vmem:[%s138 + $0x168] sm:$0xff]
        %v220 = vld [vmem:[%s138 + $0x170] sm:$0xff]
        %v221 = vld [vmem:[%s138 + $0x178] sm:$0xff]
        %v222 = vld [vmem:[%s138 + $0x180] sm:$0xff]
        %v223 = vld [vmem:[%s138 + $0x188] sm:$0xff]
        %v224 = vld [vmem:[%s138 + $0x190] sm:$0xff]
        %v225 = vld [vmem:[%s138 + $0x198] sm:$0xff]
        %v226 = vld [vmem:[%s138 + $0x1a0] sm:$0xff]
        %v227 = vld [vmem:[%s138 + $0x1a8] sm:$0xff]
        %v228 = vld [vmem:[%s138 + $0x1b0] sm:$0xff]
        %v229 = vld [vmem:[%s138 + $0x1b8] sm:$0xff]
        %v230 = vld [vmem:[%s138 + $0x1c0] sm:$0xff]
        %v231 = vld [vmem:[%s138 + $0x1c8] sm:$0xff]
        %v232 = vld [vmem:[%s138 + $0x1d0] sm:$0xff]
        %v233 = vld [vmem:[%s138 + $0x1d8] sm:$0xff]
        %v234 = vld [vmem:[%s138 + $0x1e0] sm:$0xff]
        %v235 = vld [vmem:[%s138 + $0x1e8] sm:$0xff]
        %v236 = vld [vmem:[%s138 + $0x1f0] sm:$0xff]
        %v237 = vld [vmem:[%s138 + $0x1f8] sm:$0xff]
        %v238 = vld [vmem:[%s138 + $0x200] sm:$0xff]
        %v239 = vld [vmem:[%s138 + $0x208] sm:$0xff]
        %v240 = vld [vmem:[%s138 + $0x210] sm:$0xff]
        %v241 = vld [vmem:[%s138 + $0x218] sm:$0xff]
        %v242 = vld [vmem:[%s138 + $0x220] sm:$0xff]
        %v243 = vld [vmem:[%s138 + $0x228] sm:$0xff]
        %v244 = vld [vmem:[%s138 + $0x230] sm:$0xff]
        %v245 = vld [vmem:[%s138 + $0x238] sm:$0xff]
        %v246 = vld [vmem:[%s138 + $0x240] sm:$0xff]
        %v247 = vld [vmem:[%s138 + $0x248] sm:$0xff]
        %v248 = vld [vmem:[%s138 + $0x250] sm:$0xff]
        %v249 = vld [vmem:[%s138 + $0x258] sm:$0xff]
        %v250 = vld [vmem:[%s138 + $0x260] sm:$0xff]
        %v251 = vld [vmem:[%s138 + $0x268] sm:$0xff]
        %v252 = vld [vmem:[%s138 + $0x270] sm:$0xff]
        %v253 = vld [vmem:[%s138 + $0x278] sm:$0xff]
        %v254 = vld [vmem:[%s138 + $0x280] sm:$0xff]
        %v255 = vld [vmem:[%s138 + $0x288] sm:$0xff]
        %v256 = vld [vmem:[%s138 + $0x290] sm:$0xff]
        %v257 = vld [vmem:[%s138 + $0x298] sm:$0xff]
        %v258 = vld [vmem:[%s138 + $0x2a0] sm:$0xff]
        %v259 = vld [vmem:[%s138 + $0x2a8] sm:$0xff]
        %v260 = vld [vmem:[%s138 + $0x2b0] sm:$0xff]
        %v261 = vld [vmem:[%s138 + $0x2b8] sm:$0xff]
        %v262 = vld [vmem:[%s138 + $0x2c0] sm:$0xff]
        %v263 = vld [vmem:[%s138 + $0x2c8] sm:$0xff]
        %v264 = vld [vmem:[%s138 + $0x2d0] sm:$0xff]
        %v265 = vld [vmem:[%s138 + $0x2d8] sm:$0xff]
        %v266 = vld [vmem:[%s138 + $0x2e0] sm:$0xff]
        %v267 = vld [vmem:[%s138 + $0x2e8] sm:$0xff]
        %v268 = vld [vmem:[%s138 + $0x2f0] sm:$0xff]
        %v269 = vld [vmem:[%s138 + $0x2f8] sm:$0xff]
        %v270 = vld [vmem:[%s138 + $0x300] sm:$0xff]
        %v271 = vld [vmem:[%s138 + $0x308] sm:$0xff]
        %v272 = vld [vmem:[%s138 + $0x310] sm:$0xff]
        %v273 = vld [vmem:[%s138 + $0x318] sm:$0xff]
        %v274 = vld [vmem:[%s138 + $0x320] sm:$0xff]
        %v275 = vld [vmem:[%s138 + $0x328] sm:$0xff]
        %v276 = vld [vmem:[%s138 + $0x330] sm:$0xff]
        %v277 = vld [vmem:[%s138 + $0x338] sm:$0xff]
        %v278 = vld [vmem:[%s138 + $0x340] sm:$0xff]
        %v279 = vld [vmem:[%s138 + $0x348] sm:$0xff]
        %v280 = vld [vmem:[%s138 + $0x350] sm:$0xff]
        %v281 = vld [vmem:[%s138 + $0x358] sm:$0xff]
        %v282 = vld [vmem:[%s138 + $0x360] sm:$0xff]
        %v283 = vld [vmem:[%s138 + $0x368] sm:$0xff]
        %v284 = vld [vmem:[%s138 + $0x370] sm:$0xff]
        %v285 = vld [vmem:[%s138 + $0x378] sm:$0xff]
        %v286 = vld [vmem:[%s138 + $0x380] sm:$0xff]
        %v287 = vld [vmem:[%s138 + $0x388] sm:$0xff]
        %v288 = vld [vmem:[%s138 + $0x390] sm:$0xff]
        %v289 = vld [vmem:[%s138 + $0x398] sm:$0xff]
        %v290 = vld [vmem:[%s138 + $0x3a0] sm:$0xff]
        %v291 = vld [vmem:[%s138 + $0x3a8] sm:$0xff]
        %v292 = vld [vmem:[%s138 + $0x3b0] sm:$0xff]
        %v293 = vld [vmem:[%s138 + $0x3b8] sm:$0xff]
        %v294 = vld [vmem:[%s138 + $0x3c0] sm:$0xff]
        %v295 = vld [vmem:[%s138 + $0x3c8] sm:$0xff]
        %v296 = vld [vmem:[%s138 + $0x3d0] sm:$0xff]
        %v297 = vld [vmem:[%s138 + $0x3d8] sm:$0xff]
        %v298 = vld [vmem:[%s138 + $0x3e0] sm:$0xff]
        %v299 = vld [vmem:[%s138 + $0x3e8] sm:$0xff]
        %v300 = vld [vmem:[%s138 + $0x3f0] sm:$0xff]
        %v301 = vld [vmem:[%s138 + $0x3f8] sm:$0xff]
        %v302 = vld [vmem:[%s138 + $0x400] sm:$0xff]
        %v303 = vld [vmem:[%s138 + $0x408] sm:$0xff]
        %v304 = vld [vmem:[%s138 + $0x410] sm:$0xff]
        %v305 = vld [vmem:[%s138 + $0x418] sm:$0xff]
        %v306 = vld [vmem:[%s138 + $0x420] sm:$0xff]
        %v307 = vld [vmem:[%s138 + $0x428] sm:$0xff]
        %v308 = vld [vmem:[%s138 + $0x430] sm:$0xff]
        %v309 = vld [vmem:[%s138 + $0x438] sm:$0xff]
        %v310 = vld [vmem:[%s138 + $0x440] sm:$0xff]
        %v311 = vld [vmem:[%s138 + $0x448] sm:$0xff]
        %v312 = vld [vmem:[%s138 + $0x450] sm:$0xff]
        %v313 = vld [vmem:[%s138 + $0x458] sm:$0xff]
        %v314 = vld [vmem:[%s138 + $0x460] sm:$0xff]
        %v315 = vld [vmem:[%s138 + $0x468] sm:$0xff]
        %v316 = vld [vmem:[%s138 + $0x470] sm:$0xff]
        %v317 = vld [vmem:[%s138 + $0x478] sm:$0xff]
        %v318 = vld [vmem:[%s138 + $0x480] sm:$0xff]
        %v319 = vld [vmem:[%s138 + $0x488] sm:$0xff]
        %v320 = vld [vmem:[%s138 + $0x490] sm:$0xff]
        %v321 = vld [vmem:[%s138 + $0x498] sm:$0xff]
        %v322 = vld [vmem:[%s138 + $0x4a0] sm:$0xff]
        %v323 = vld [vmem:[%s138 + $0x4a8] sm:$0xff]
        %v324 = vld [vmem:[%s138 + $0x4b0] sm:$0xff]
        %v325 = vld [vmem:[%s138 + $0x4b8] sm:$0xff]
        %v326 = vld [vmem:[%s138 + $0x4c0] sm:$0xff]
        %v327 = vld [vmem:[%s138 + $0x4c8] sm:$0xff]
        %v328 = vld [vmem:[%s138 + $0x4d0] sm:$0xff]
        %v329 = vld [vmem:[%s138 + $0x4d8] sm:$0xff]
        %v330 = vld [vmem:[%s138 + $0x4e0] sm:$0xff]
        %v331 = vld [vmem:[%s138 + $0x4e8] sm:$0xff]
        %v332 = vld [vmem:[%s138 + $0x4f0] sm:$0xff]
        %v333 = vld [vmem:[%s138 + $0x4f8] sm:$0xff]
        %v334 = vld [vmem:[%s138 + $0x500] sm:$0xff]
        %v335 = vld [vmem:[%s138 + $0x508] sm:$0xff]
        %v336 = vld [vmem:[%s138 + $0x510] sm:$0xff]
        %v337 = vld [vmem:[%s138 + $0x518] sm:$0xff]
        %v338 = vld [vmem:[%s138 + $0x520] sm:$0xff]
        %v339 = vld [vmem:[%s138 + $0x528] sm:$0xff]
        %v340 = vld [vmem:[%s138 + $0x530] sm:$0xff]
        %v341 = vld [vmem:[%s138 + $0x538] sm:$0xff]
        %v342 = vld [vmem:[%s138 + $0x540] sm:$0xff]
        %v343 = vld [vmem:[%s138 + $0x548] sm:$0xff]
        %v344 = vld [vmem:[%s138 + $0x550] sm:$0xff]
        %v345 = vld [vmem:[%s138 + $0x558] sm:$0xff]
        %v346 = vld [vmem:[%s138 + $0x560] sm:$0xff]
        %v347 = vld [vmem:[%s138 + $0x568] sm:$0xff]
        %v348 = vld [vmem:[%s138 + $0x570] sm:$0xff]
        %v349 = vld [vmem:[%s138 + $0x578] sm:$0xff]
        %v350 = vld [vmem:[%s138 + $0x580] sm:$0xff]
        %v351 = vld [vmem:[%s138 + $0x588] sm:$0xff]
        %v352 = vld [vmem:[%s138 + $0x590] sm:$0xff]
        %v353 = vld [vmem:[%s138 + $0x598] sm:$0xff]
        %v354 = vld [vmem:[%s138 + $0x5a0] sm:$0xff]
        %v355 = vld [vmem:[%s138 + $0x5a8] sm:$0xff]
        %v356 = vld [vmem:[%s138 + $0x5b0] sm:$0xff]
        %v357 = vld [vmem:[%s138 + $0x5b8] sm:$0xff]
        %v358 = vld [vmem:[%s138 + $0x5c0] sm:$0xff]
        %v359 = vld [vmem:[%s138 + $0x5c8] sm:$0xff]
        %v360 = vld [vmem:[%s138 + $0x5d0] sm:$0xff]
        %v361 = vld [vmem:[%s138 + $0x5d8] sm:$0xff]
        %v362 = vld [vmem:[%s138 + $0x5e0] sm:$0xff]
        %v363 = vld [vmem:[%s138 + $0x5e8] sm:$0xff]
        %v364 = vld [vmem:[%s138 + $0x5f0] sm:$0xff]
        %v365 = vld [vmem:[%s138 + $0x5f8] sm:$0xff]
        %v366 = vld [vmem:[%s138 + $0x600] sm:$0xff]
        %v367 = vld [vmem:[%s138 + $0x608] sm:$0xff]
        %v368 = vld [vmem:[%s138 + $0x610] sm:$0xff]
        %v369 = vld [vmem:[%s138 + $0x618] sm:$0xff]
        %v370 = vld [vmem:[%s138 + $0x620] sm:$0xff]
        %v371 = vld [vmem:[%s138 + $0x628] sm:$0xff]
        %v372 = vld [vmem:[%s138 + $0x630] sm:$0xff]
        %v373 = vld [vmem:[%s138 + $0x638] sm:$0xff]
        %v374 = vld [vmem:[%s138 + $0x640] sm:$0xff]
        %v375 = vld [vmem:[%s138 + $0x648] sm:$0xff]
        %v376 = vld [vmem:[%s138 + $0x650] sm:$0xff]
        %v377 = vld [vmem:[%s138 + $0x658] sm:$0xff]
        %v378 = vld [vmem:[%s138 + $0x660] sm:$0xff]
        %v379 = vld [vmem:[%s138 + $0x668] sm:$0xff]
        %v380 = vld [vmem:[%s138 + $0x670] sm:$0xff]
        %v381 = vld [vmem:[%s138 + $0x678] sm:$0xff]
        %v382 = vld [vmem:[%s138 + $0x680] sm:$0xff]
        %v383 = vld [vmem:[%s138 + $0x688] sm:$0xff]
        %v384 = vld [vmem:[%s138 + $0x690] sm:$0xff]
        %v385 = vld [vmem:[%s138 + $0x698] sm:$0xff]
        %v386 = vld [vmem:[%s138 + $0x6a0] sm:$0xff]
        %v387 = vld [vmem:[%s138 + $0x6a8] sm:$0xff]
        %v388 = vld [vmem:[%s138 + $0x6b0] sm:$0xff]
        %v389 = vld [vmem:[%s138 + $0x6b8] sm:$0xff]
        %v390 = vld [vmem:[%s138 + $0x6c0] sm:$0xff]
        %v391 = vld [vmem:[%s138 + $0x6c8] sm:$0xff]
        %v392 = vld [vmem:[%s138 + $0x6d0] sm:$0xff]
        %v393 = vld [vmem:[%s138 + $0x6d8] sm:$0xff]
        %v394 = vld [vmem:[%s138 + $0x6e0] sm:$0xff]
        %v395 = vld [vmem:[%s138 + $0x6e8] sm:$0xff]
        %v396 = vld [vmem:[%s138 + $0x6f0] sm:$0xff]
        %v397 = vld [vmem:[%s138 + $0x6f8] sm:$0xff]
        %v398 = vld [vmem:[%s138 + $0x700] sm:$0xff]
        %v399 = vld [vmem:[%s138 + $0x708] sm:$0xff]
        %v400 = vld [vmem:[%s138 + $0x710] sm:$0xff]
        %v401 = vld [vmem:[%s138 + $0x718] sm:$0xff]
        %v402 = vld [vmem:[%s138 + $0x720] sm:$0xff]
        %v403 = vld [vmem:[%s138 + $0x728] sm:$0xff]
        %v404 = vld [vmem:[%s138 + $0x730] sm:$0xff]
        %v405 = vld [vmem:[%s138 + $0x738] sm:$0xff]
        %v406 = vld [vmem:[%s138 + $0x740] sm:$0xff]
        %v407 = vld [vmem:[%s138 + $0x748] sm:$0xff]
        %v408 = vld [vmem:[%s138 + $0x750] sm:$0xff]
        %v409 = vld [vmem:[%s138 + $0x758] sm:$0xff]
        %v410 = vld [vmem:[%s138 + $0x760] sm:$0xff]
        %v411 = vld [vmem:[%s138 + $0x768] sm:$0xff]
        %v412 = vld [vmem:[%s138 + $0x770] sm:$0xff]
        %v413 = vld [vmem:[%s138 + $0x778] sm:$0xff]
        %v414 = vld [vmem:[%s138 + $0x780] sm:$0xff]
        %v415 = vld [vmem:[%s138 + $0x788] sm:$0xff]
        %v416 = vld [vmem:[%s138 + $0x790] sm:$0xff]
        %v417 = vld [vmem:[%s138 + $0x798] sm:$0xff]
        %v418 = vld [vmem:[%s138 + $0x7a0] sm:$0xff]
        %v419 = vld [vmem:[%s138 + $0x7a8] sm:$0xff]
        %v420 = vld [vmem:[%s138 + $0x7b0] sm:$0xff]
        %v421 = vld [vmem:[%s138 + $0x7b8] sm:$0xff]
        %v422 = vld [vmem:[%s138 + $0x7c0] sm:$0xff]
        %v423 = vld [vmem:[%s138 + $0x7c8] sm:$0xff]
        %v424 = vld [vmem:[%s138 + $0x7d0] sm:$0xff]
        %v425 = vld [vmem:[%s138 + $0x7d8] sm:$0xff]
        %v426 = vld [vmem:[%s138 + $0x7e0] sm:$0xff]
        %v427 = vld [vmem:[%s138 + $0x7e8] sm:$0xff]
        %v428 = vld [vmem:[%s138 + $0x7f0] sm:$0xff]
        %v429 = vld [vmem:[%s138 + $0x7f8] sm:$0xff]
        %v430 = vld [vmem:[%s138 + $0x800] sm:$0xff]
        %v431 = vld [vmem:[%s138 + $0x808] sm:$0xff]
        %v432 = vld [vmem:[%s138 + $0x810] sm:$0xff]
        %v433 = vld [vmem:[%s138 + $0x818] sm:$0xff]
        %v434 = vld [vmem:[%s138 + $0x820] sm:$0xff]
        %v435 = vld [vmem:[%s138 + $0x828] sm:$0xff]
        %v436 = vld [vmem:[%s138 + $0x830] sm:$0xff]
        %v437 = vld [vmem:[%s138 + $0x838] sm:$0xff]
        %v438 = vld [vmem:[%s138 + $0x840] sm:$0xff]
        %v439 = vld [vmem:[%s138 + $0x848] sm:$0xff]
        %v440 = vld [vmem:[%s138 + $0x850] sm:$0xff]
        %v441 = vld [vmem:[%s138 + $0x858] sm:$0xff]
        %v442 = vld [vmem:[%s138 + $0x860] sm:$0xff]
        %v443 = vld [vmem:[%s138 + $0x868] sm:$0xff]
        %v444 = vld [vmem:[%s138 + $0x870] sm:$0xff]
        %v445 = vld [vmem:[%s138 + $0x878] sm:$0xff]
        %v446 = vld [vmem:[%s138 + $0x880] sm:$0xff]
        %v447 = vld [vmem:[%s138 + $0x888] sm:$0xff]
        %v448 = vld [vmem:[%s138 + $0x890] sm:$0xff]
        %v449 = vld [vmem:[%s138 + $0x898] sm:$0xff]
        %v450 = vld [vmem:[%s138 + $0x8a0] sm:$0xff]
        %v451 = vld [vmem:[%s138 + $0x8a8] sm:$0xff]
        %v452 = vld [vmem:[%s138 + $0x8b0] sm:$0xff]
        %v453 = vld [vmem:[%s138 + $0x8b8] sm:$0xff]
        %v454 = vld [vmem:[%s138 + $0x8c0] sm:$0xff]
        %v455 = vld [vmem:[%s138 + $0x8c8] sm:$0xff]
        %v456 = vld [vmem:[%s138 + $0x8d0] sm:$0xff]
        %v457 = vld [vmem:[%s138 + $0x8d8] sm:$0xff]
        %v458 = vld [vmem:[%s138 + $0x8e0] sm:$0xff]
        %v459 = vld [vmem:[%s138 + $0x8e8] sm:$0xff]
        %v460 = vld [vmem:[%s138 + $0x8f0] sm:$0xff]
        %v461 = vld [vmem:[%s138 + $0x8f8] sm:$0xff]
        %v462 = vld [vmem:[%s138 + $0x900] sm:$0xff]
        %v463 = vld [vmem:[%s138 + $0x908] sm:$0xff]
        %v464 = vld [vmem:[%s138 + $0x910] sm:$0xff]
        %v465 = vld [vmem:[%s138 + $0x918] sm:$0xff]
        %v466 = vld [vmem:[%s138 + $0x920] sm:$0xff]
        %v467 = vld [vmem:[%s138 + $0x928] sm:$0xff]
        %v468 = vld [vmem:[%s138 + $0x930] sm:$0xff]
        %v469 = vld [vmem:[%s138 + $0x938] sm:$0xff]
        %v470 = vld [vmem:[%s138 + $0x940] sm:$0xff]
        %v471 = vld [vmem:[%s138 + $0x948] sm:$0xff]
        %v472 = vld [vmem:[%s138 + $0x950] sm:$0xff]
        %v473 = vld [vmem:[%s138 + $0x958] sm:$0xff]
        %v474 = vld [vmem:[%s138 + $0x960] sm:$0xff]
        %v475 = vld [vmem:[%s138 + $0x968] sm:$0xff]
        %v476 = vld [vmem:[%s138 + $0x970] sm:$0xff]
        %v477 = vld [vmem:[%s138 + $0x978] sm:$0xff]
        %v478 = vld [vmem:[%s138 + $0x980] sm:$0xff]
        %v479 = vld [vmem:[%s138 + $0x988] sm:$0xff]
        %v480 = vld [vmem:[%s138 + $0x990] sm:$0xff]
        %v481 = vld [vmem:[%s138 + $0x998] sm:$0xff]
        %v482 = vld [vmem:[%s138 + $0x9a0] sm:$0xff]
        %v483 = vld [vmem:[%s138 + $0x9a8] sm:$0xff]
        %v484 = vld [vmem:[%s138 + $0x9b0] sm:$0xff]
        %v485 = vld [vmem:[%s138 + $0x9b8] sm:$0xff]
        %v486 = vld [vmem:[%s138 + $0x9c0] sm:$0xff]
        %v487 = vld [vmem:[%s138 + $0x9c8] sm:$0xff]
        %v488 = vld [vmem:[%s138 + $0x9d0] sm:$0xff]
        %v489 = vld [vmem:[%s138 + $0x9d8] sm:$0xff]
        %v490 = vld [vmem:[%s138 + $0x9e0] sm:$0xff]
        %v491 = vld [vmem:[%s138 + $0x9e8] sm:$0xff]
        %v492 = vld [vmem:[%s138 + $0x9f0] sm:$0xff]
        %v493 = vld [vmem:[%s138 + $0x9f8] sm:$0xff]
        %v494 = vld [vmem:[%s138 + $0xa00] sm:$0xff]
        %v495 = vld [vmem:[%s138 + $0xa08] sm:$0xff]
        %v496 = vld [vmem:[%s138 + $0xa10] sm:$0xff]
        %v497 = vld [vmem:[%s138 + $0xa18] sm:$0xff]
        %v498 = vld [vmem:[%s138 + $0xa20] sm:$0xff]
        %v499 = vld [vmem:[%s138 + $0xa28] sm:$0xff]
        %v500 = vld [vmem:[%s138 + $0xa30] sm:$0xff]
        %v501 = vld [vmem:[%s138 + $0xa38] sm:$0xff]
        %v502 = vld [vmem:[%s138 + $0xa40] sm:$0xff]
        %v503 = vld [vmem:[%s138 + $0xa48] sm:$0xff]
        %v504 = vld [vmem:[%s138 + $0xa50] sm:$0xff]
        %v505 = vld [vmem:[%s138 + $0xa58] sm:$0xff]
        %v506 = vld [vmem:[%s138 + $0xa60] sm:$0xff]
        %v507 = vld [vmem:[%s138 + $0xa68] sm:$0xff]
        %v508 = vld [vmem:[%s138 + $0xa70] sm:$0xff]
        %v509 = vld [vmem:[%s138 + $0xa78] sm:$0xff]
        %v510 = vld [vmem:[%s138 + $0xa80] sm:$0xff]
        %v511 = vld [vmem:[%s138 + $0xa88] sm:$0xff]
        %v512 = vld [vmem:[%s138 + $0xa90] sm:$0xff]
        %v513 = vld [vmem:[%s138 + $0xa98] sm:$0xff]
        %v514 = vld [vmem:[%s138 + $0xaa0] sm:$0xff]
        %v515 = vld [vmem:[%s138 + $0xaa8] sm:$0xff]
        %v516 = vld [vmem:[%s138 + $0xab0] sm:$0xff]
        %v517 = vld [vmem:[%s138 + $0xab8] sm:$0xff]
        %v518 = vld [vmem:[%s138 + $0xac0] sm:$0xff]
        %v519 = vld [vmem:[%s138 + $0xac8] sm:$0xff]
        %v520 = vld [vmem:[%s138 + $0xad0] sm:$0xff]
        %v521 = vld [vmem:[%s138 + $0xad8] sm:$0xff]
        %v522 = vld [vmem:[%s138 + $0xae0] sm:$0xff]
        %v523 = vld [vmem:[%s138 + $0xae8] sm:$0xff]
        %v524 = vld [vmem:[%s138 + $0xaf0] sm:$0xff]
        %v525 = vld [vmem:[%s138 + $0xaf8] sm:$0xff]
        %v526 = vld [vmem:[%s138 + $0xb00] sm:$0xff]
        %v527 = vld [vmem:[%s138 + $0xb08] sm:$0xff]
        %v528 = vld [vmem:[%s138 + $0xb10] sm:$0xff]
        %v529 = vld [vmem:[%s138 + $0xb18] sm:$0xff]
        %v530 = vld [vmem:[%s138 + $0xb20] sm:$0xff]
        %v531 = vld [vmem:[%s138 + $0xb28] sm:$0xff]
        %v532 = vld [vmem:[%s138 + $0xb30] sm:$0xff]
        %v533 = vld [vmem:[%s138 + $0xb38] sm:$0xff]
        %v534 = vld [vmem:[%s138 + $0xb40] sm:$0xff]
        %v535 = vld [vmem:[%s138 + $0xb48] sm:$0xff]
        %v536 = vld [vmem:[%s138 + $0xb50] sm:$0xff]
        %v537 = vld [vmem:[%s138 + $0xb58] sm:$0xff]
        %v538 = vld [vmem:[%s138 + $0xb60] sm:$0xff]
        %v539 = vld [vmem:[%s138 + $0xb68] sm:$0xff]
        %v540 = vld [vmem:[%s138 + $0xb70] sm:$0xff]
        %v541 = vld [vmem:[%s138 + $0xb78] sm:$0xff]
        %v542 = vld [vmem:[%s138 + $0xb80] sm:$0xff]
        %v543 = vld [vmem:[%s138 + $0xb88] sm:$0xff]
        %v544 = vld [vmem:[%s138 + $0xb90] sm:$0xff]
        %v545 = vld [vmem:[%s138 + $0xb98] sm:$0xff]
        %v546 = vld [vmem:[%s138 + $0xba0] sm:$0xff]
        %v547 = vld [vmem:[%s138 + $0xba8] sm:$0xff]
        %v548 = vld [vmem:[%s138 + $0xbb0] sm:$0xff]
        %v549 = vld [vmem:[%s138 + $0xbb8] sm:$0xff]
        %v550 = vld [vmem:[%s138 + $0xbc0] sm:$0xff]
        %v551 = vld [vmem:[%s138 + $0xbc8] sm:$0xff]
        %v552 = vld [vmem:[%s138 + $0xbd0] sm:$0xff]
        %v553 = vld [vmem:[%s138 + $0xbd8] sm:$0xff]
        %v554 = vld [vmem:[%s138 + $0xbe0] sm:$0xff]
        %v555 = vld [vmem:[%s138 + $0xbe8] sm:$0xff]
        %v556 = vld [vmem:[%s138 + $0xbf0] sm:$0xff]
        %v557 = vld [vmem:[%s138 + $0xbf8] sm:$0xff]
        %v558 = vld [vmem:[%s138 + $0xc00] sm:$0xff]
        %v559 = vld [vmem:[%s138 + $0xc08] sm:$0xff]
        %v560 = vld [vmem:[%s138 + $0xc10] sm:$0xff]
        %v561 = vld [vmem:[%s138 + $0xc18] sm:$0xff]
        %v562 = vld [vmem:[%s138 + $0xc20] sm:$0xff]
        %v563 = vld [vmem:[%s138 + $0xc28] sm:$0xff]
        %v564 = vld [vmem:[%s138 + $0xc30] sm:$0xff]
        %v565 = vld [vmem:[%s138 + $0xc38] sm:$0xff]
        %v566 = vld [vmem:[%s138 + $0xc40] sm:$0xff]
        %v567 = vld [vmem:[%s138 + $0xc48] sm:$0xff]
        %v568 = vld [vmem:[%s138 + $0xc50] sm:$0xff]
        %v569 = vld [vmem:[%s138 + $0xc58] sm:$0xff]
        %v570 = vld [vmem:[%s138 + $0xc60] sm:$0xff]
        %v571 = vld [vmem:[%s138 + $0xc68] sm:$0xff]
        %v572 = vld [vmem:[%s138 + $0xc70] sm:$0xff]
        %v573 = vld [vmem:[%s138 + $0xc78] sm:$0xff]
        %v574 = vld [vmem:[%s138 + $0xc80] sm:$0xff]
        %v575 = vld [vmem:[%s138 + $0xc88] sm:$0xff]
        %v576 = vld [vmem:[%s138 + $0xc90] sm:$0xff]
        %v577 = vld [vmem:[%s138 + $0xc98] sm:$0xff]
        %v578 = vld [vmem:[%s138 + $0xca0] sm:$0xff]
        %v579 = vld [vmem:[%s138 + $0xca8] sm:$0xff]
        %v580 = vld [vmem:[%s138 + $0xcb0] sm:$0xff]
        %v581 = vld [vmem:[%s138 + $0xcb8] sm:$0xff]
        %v582 = vld [vmem:[%s138 + $0xcc0] sm:$0xff]
        %v583 = vld [vmem:[%s138 + $0xcc8] sm:$0xff]
        %v584 = vld [vmem:[%s138 + $0xcd0] sm:$0xff]
        %v585 = vld [vmem:[%s138 + $0xcd8] sm:$0xff]
        %v586 = vld [vmem:[%s138 + $0xce0] sm:$0xff]
        %v587 = vld [vmem:[%s138 + $0xce8] sm:$0xff]
        %v588 = vld [vmem:[%s138 + $0xcf0] sm:$0xff]
        %v589 = vld [vmem:[%s138 + $0xcf8] sm:$0xff]
        %v590 = vld [vmem:[%s138 + $0xd00] sm:$0xff]
        %v591 = vld [vmem:[%s138 + $0xd08] sm:$0xff]
        %v592 = vld [vmem:[%s138 + $0xd10] sm:$0xff]
        %v593 = vld [vmem:[%s138 + $0xd18] sm:$0xff]
        %v594 = vld [vmem:[%s138 + $0xd20] sm:$0xff]
        %v595 = vld [vmem:[%s138 + $0xd28] sm:$0xff]
        %v596 = vld [vmem:[%s138 + $0xd30] sm:$0xff]
        %v597 = vld [vmem:[%s138 + $0xd38] sm:$0xff]
        %v598 = vld [vmem:[%s138 + $0xd40] sm:$0xff]
        %v599 = vld [vmem:[%s138 + $0xd48] sm:$0xff]
        %v600 = vld [vmem:[%s138 + $0xd50] sm:$0xff]
        %v601 = vld [vmem:[%s138 + $0xd58] sm:$0xff]
        %v602 = vld [vmem:[%s138 + $0xd60] sm:$0xff]
        %v603 = vld [vmem:[%s138 + $0xd68] sm:$0xff]
        %v604 = vld [vmem:[%s138 + $0xd70] sm:$0xff]
        %v605 = vld [vmem:[%s138 + $0xd78] sm:$0xff]
        %v606 = vld [vmem:[%s138 + $0xd80] sm:$0xff]
        %v607 = vld [vmem:[%s138 + $0xd88] sm:$0xff]
        %v608 = vld [vmem:[%s138 + $0xd90] sm:$0xff]
        %v609 = vld [vmem:[%s138 + $0xd98] sm:$0xff]
        %v610 = vld [vmem:[%s138 + $0xda0] sm:$0xff]
        %v611 = vld [vmem:[%s138 + $0xda8] sm:$0xff]
        %v612 = vld [vmem:[%s138 + $0xdb0] sm:$0xff]
        %v613 = vld [vmem:[%s138 + $0xdb8] sm:$0xff]
        %v614 = vld [vmem:[%s138 + $0xdc0] sm:$0xff]
        %v615 = vld [vmem:[%s138 + $0xdc8] sm:$0xff]
        %v616 = vld [vmem:[%s138 + $0xdd0] sm:$0xff]
        %v617 = vld [vmem:[%s138 + $0xdd8] sm:$0xff]
        %v618 = vld [vmem:[%s138 + $0xde0] sm:$0xff]
        %v619 = vld [vmem:[%s138 + $0xde8] sm:$0xff]
        %v620 = vld [vmem:[%s138 + $0xdf0] sm:$0xff]
        %v621 = vld [vmem:[%s138 + $0xdf8] sm:$0xff]
        %v622 = vld [vmem:[%s138 + $0xe00] sm:$0xff]
        %v623 = vld [vmem:[%s138 + $0xe08] sm:$0xff]
        %v624 = vld [vmem:[%s138 + $0xe10] sm:$0xff]
        %v625 = vld [vmem:[%s138 + $0xe18] sm:$0xff]
        %v626 = vld [vmem:[%s138 + $0xe20] sm:$0xff]
        %v627 = vld [vmem:[%s138 + $0xe28] sm:$0xff]
        %v628 = vld [vmem:[%s138 + $0xe30] sm:$0xff]
        %v629 = vld [vmem:[%s138 + $0xe38] sm:$0xff]
        %v630 = vld [vmem:[%s138 + $0xe40] sm:$0xff]
        %v631 = vld [vmem:[%s138 + $0xe48] sm:$0xff]
        %v632 = vld [vmem:[%s138 + $0xe50] sm:$0xff]
        %v633 = vld [vmem:[%s138 + $0xe58] sm:$0xff]
        %v634 = vld [vmem:[%s138 + $0xe60] sm:$0xff]
        %v635 = vld [vmem:[%s138 + $0xe68] sm:$0xff]
        %v636 = vld [vmem:[%s138 + $0xe70] sm:$0xff]
        %v637 = vld [vmem:[%s138 + $0xe78] sm:$0xff]
        %v638 = vld [vmem:[%s138 + $0xe80] sm:$0xff]
        %v639 = vld [vmem:[%s138 + $0xe88] sm:$0xff]
        %v640 = vld [vmem:[%s138 + $0xe90] sm:$0xff]
        %v641 = vld [vmem:[%s138 + $0xe98] sm:$0xff]
        %v642 = vld [vmem:[%s138 + $0xea0] sm:$0xff]
        %v643 = vld [vmem:[%s138 + $0xea8] sm:$0xff]
        %v644 = vld [vmem:[%s138 + $0xeb0] sm:$0xff]
        %v645 = vld [vmem:[%s138 + $0xeb8] sm:$0xff]
        %v646 = vld [vmem:[%s138 + $0xec0] sm:$0xff]
        %v647 = vld [vmem:[%s138 + $0xec8] sm:$0xff]
        %v648 = vld [vmem:[%s138 + $0xed0] sm:$0xff]
        %v649 = vld [vmem:[%s138 + $0xed8] sm:$0xff]
        %v650 = vld [vmem:[%s138 + $0xee0] sm:$0xff]
        %v651 = vld [vmem:[%s138 + $0xee8] sm:$0xff]
        %v652 = vld [vmem:[%s138 + $0xef0] sm:$0xff]
        %v653 = vld [vmem:[%s138 + $0xef8] sm:$0xff]
        %v654 = vld [vmem:[%s138 + $0xf00] sm:$0xff]
        %v655 = vld [vmem:[%s138 + $0xf08] sm:$0xff]
        %v656 = vld [vmem:[%s138 + $0xf10] sm:$0xff]
        %v657 = vld [vmem:[%s138 + $0xf18] sm:$0xff]
        %v658 = vld [vmem:[%s138 + $0xf20] sm:$0xff]
        %v659 = vld [vmem:[%s138 + $0xf28] sm:$0xff]
        %v660 = vld [vmem:[%s138 + $0xf30] sm:$0xff]
        %v661 = vld [vmem:[%s138 + $0xf38] sm:$0xff]
        %v662 = vld [vmem:[%s138 + $0xf40] sm:$0xff]
        %v663 = vld [vmem:[%s138 + $0xf48] sm:$0xff]
        %v664 = vld [vmem:[%s138 + $0xf50] sm:$0xff]
        %v665 = vld [vmem:[%s138 + $0xf58] sm:$0xff]
        %v666 = vld [vmem:[%s138 + $0xf60] sm:$0xff]
        %v667 = vld [vmem:[%s138 + $0xf68] sm:$0xff]
        %v668 = vld [vmem:[%s138 + $0xf70] sm:$0xff]
        %v669 = vld [vmem:[%s138 + $0xf78] sm:$0xff]
        %v670 = vld [vmem:[%s138 + $0xf80] sm:$0xff]
        %v671 = vld [vmem:[%s138 + $0xf88] sm:$0xff]
        %v672 = vld [vmem:[%s138 + $0xf90] sm:$0xff]
        %v673 = vld [vmem:[%s138 + $0xf98] sm:$0xff]
        %v674 = vld [vmem:[%s138 + $0xfa0] sm:$0xff]
        %v675 = vld [vmem:[%s138 + $0xfa8] sm:$0xff]
        %v676 = vld [vmem:[%s138 + $0xfb0] sm:$0xff]
        %v677 = vld [vmem:[%s138 + $0xfb8] sm:$0xff]
        %v678 = vld [vmem:[%s138 + $0xfc0] sm:$0xff]
        %v679 = vld [vmem:[%s138 + $0xfc8] sm:$0xff]
        %v680 = vld [vmem:[%s138 + $0xfd0] sm:$0xff]
        %v681 = vld [vmem:[%s138 + $0xfd8] sm:$0xff]
        %v682 = vld [vmem:[%s138 + $0xfe0] sm:$0xff]
        %v683 = vld [vmem:[%s138 + $0xfe8] sm:$0xff]
        %v684 = vld [vmem:[%s138 + $0xff0] sm:$0xff]
        %v685 = vld [vmem:[%s138 + $0xff8] sm:$0xff]
        %686 = vmatprep.subr.mxu0 %v175
        %687 = vmatpush1.msra.mxu0 %v174
        %688 = vmatprep.subr.mxu0 %v179
        %689 = vmatpush1.msra.mxu0 %v178
        %690 = vmatprep.subr.mxu0 %v183
        %691 = vmatpush1.msra.mxu0 %v182
        %692 = vmatprep.subr.mxu0 %v187
        %693 = vmatpush1.msra.mxu0 %v186
        %694 = vmatprep.subr.mxu0 %v191
        %695 = vmatpush1.msra.mxu0 %v190
        %696 = vmatprep.subr.mxu0 %v195
        %697 = vmatpush1.msra.mxu0 %v194
        %698 = vmatprep.subr.mxu0 %v199
        %699 = vmatpush1.msra.mxu0 %v198
        %700 = vmatprep.subr.mxu0 %v203
        %701 = vmatpush1.msra.mxu0 %v202
        %702 = vmatprep.subr.mxu0 %v207
        %703 = vmatpush1.msra.mxu0 %v206
        %704 = vmatprep.subr.mxu0 %v211
        %705 = vmatpush1.msra.mxu0 %v210
        %706 = vmatprep.subr.mxu0 %v215
        %707 = vmatpush1.msra.mxu0 %v214
        %708 = vmatprep.subr.mxu0 %v219
        %709 = vmatpush1.msra.mxu0 %v218
        %710 = vmatprep.subr.mxu0 %v223
        %711 = vmatpush1.msra.mxu0 %v222
        %712 = vmatprep.subr.mxu0 %v227
        %713 = vmatpush1.msra.mxu0 %v226
        %714 = vmatprep.subr.mxu0 %v231
        %715 = vmatpush1.msra.mxu0 %v230
        %716 = vmatprep.subr.mxu0 %v235
        %717 = vmatpush1.msra.mxu0 %v234
        %718 = vmatprep.subr.mxu0 %v239
        %719 = vmatpush1.msra.mxu0 %v238
        %720 = vmatprep.subr.mxu0 %v243
        %721 = vmatpush1.msra.mxu0 %v242
        %722 = vmatprep.subr.mxu0 %v247
        %723 = vmatpush1.msra.mxu0 %v246
        %724 = vmatprep.subr.mxu0 %v251
        %725 = vmatpush1.msra.mxu0 %v250
        %726 = vmatprep.subr.mxu0 %v255
        %727 = vmatpush1.msra.mxu0 %v254
        %728 = vmatprep.subr.mxu0 %v259
        %729 = vmatpush1.msra.mxu0 %v258
        %730 = vmatprep.subr.mxu0 %v263
        %731 = vmatpush1.msra.mxu0 %v262
        %732 = vmatprep.subr.mxu0 %v267
        %733 = vmatpush1.msra.mxu0 %v266
        %734 = vmatprep.subr.mxu0 %v271
        %735 = vmatpush1.msra.mxu0 %v270
        %736 = vmatprep.subr.mxu0 %v275
        %737 = vmatpush1.msra.mxu0 %v274
        %738 = vmatprep.subr.mxu0 %v279
        %739 = vmatpush1.msra.mxu0 %v278
        %740 = vmatprep.subr.mxu0 %v283
        %741 = vmatpush1.msra.mxu0 %v282
        %742 = vmatprep.subr.mxu0 %v287
        %743 = vmatpush1.msra.mxu0 %v286
        %744 = vmatprep.subr.mxu0 %v291
        %745 = vmatpush1.msra.mxu0 %v290
        %746 = vmatprep.subr.mxu0 %v295
        %747 = vmatpush1.msra.mxu0 %v294
        %748 = vmatprep.subr.mxu0 %v299
        %749 = vmatpush1.msra.mxu0 %v298
        %750 = vmatprep.mubr.f32.mxu0 %v167
        %751 = vmatmul.mubr.f32.gmra.mrb[0].mxu0 %v166
        %v752 = vpop.f32.mrb[0].mxu0
        %v753 = vadd.f32 0.0, %v752
        %v754 = vpop.f32.mrb[0].mxu0
        %v755 = vadd.f32 0.0, %v754
        %756 = vdwg.mxu0
        %757 = vmatprep.subr.mxu0 %v303
        %758 = vmatpush1.msra.mxu0 %v302
        %759 = vmatprep.subr.mxu0 %v307
        %760 = vmatpush1.msra.mxu0 %v306
        %761 = vmatprep.subr.mxu0 %v311
        %762 = vmatpush1.msra.mxu0 %v310
        %763 = vmatprep.subr.mxu0 %v315
        %764 = vmatpush1.msra.mxu0 %v314
        %765 = vmatprep.subr.mxu0 %v319
        %766 = vmatpush1.msra.mxu0 %v318
        %767 = vmatprep.subr.mxu0 %v323
        %768 = vmatpush1.msra.mxu0 %v322
        %769 = vmatprep.subr.mxu0 %v327
        %770 = vmatpush1.msra.mxu0 %v326
        %771 = vmatprep.subr.mxu0 %v331
        %772 = vmatpush1.msra.mxu0 %v330
        %773 = vmatprep.subr.mxu0 %v335
        %774 = vmatpush1.msra.mxu0 %v334
        %775 = vmatprep.subr.mxu0 %v339
        %776 = vmatpush1.msra.mxu0 %v338
        %777 = vmatprep.subr.mxu0 %v343
        %778 = vmatpush1.msra.mxu0 %v342
        %779 = vmatprep.subr.mxu0 %v347
        %780 = vmatpush1.msra.mxu0 %v346
        %781 = vmatprep.subr.mxu0 %v351
        %782 = vmatpush1.msra.mxu0 %v350
        %783 = vmatprep.subr.mxu0 %v355
        %784 = vmatpush1.msra.mxu0 %v354
        %785 = vmatprep.subr.mxu0 %v359
        %786 = vmatpush1.msra.mxu0 %v358
        %787 = vmatprep.subr.mxu0 %v363
        %788 = vmatpush1.msra.mxu0 %v362
        %789 = vmatprep.subr.mxu0 %v367
        %790 = vmatpush1.msra.mxu0 %v366
        %791 = vmatprep.subr.mxu0 %v371
        %792 = vmatpush1.msra.mxu0 %v370
        %793 = vmatprep.subr.mxu0 %v375
        %794 = vmatpush1.msra.mxu0 %v374
        %795 = vmatprep.subr.mxu0 %v379
        %796 = vmatpush1.msra.mxu0 %v378
        %797 = vmatprep.subr.mxu0 %v383
        %798 = vmatpush1.msra.mxu0 %v382
        %799 = vmatprep.subr.mxu0 %v387
        %800 = vmatpush1.msra.mxu0 %v386
        %801 = vmatprep.subr.mxu0 %v391
        %802 = vmatpush1.msra.mxu0 %v390
        %803 = vmatprep.subr.mxu0 %v395
        %804 = vmatpush1.msra.mxu0 %v394
        %805 = vmatprep.subr.mxu0 %v399
        %806 = vmatpush1.msra.mxu0 %v398
        %807 = vmatprep.subr.mxu0 %v403
        %808 = vmatpush1.msra.mxu0 %v402
        %809 = vmatprep.subr.mxu0 %v407
        %810 = vmatpush1.msra.mxu0 %v406
        %811 = vmatprep.subr.mxu0 %v411
        %812 = vmatpush1.msra.mxu0 %v410
        %813 = vmatprep.subr.mxu0 %v415
        %814 = vmatpush1.msra.mxu0 %v414
        %815 = vmatprep.subr.mxu0 %v419
        %816 = vmatpush1.msra.mxu0 %v418
        %817 = vmatprep.subr.mxu0 %v423
        %818 = vmatpush1.msra.mxu0 %v422
        %819 = vmatprep.subr.mxu0 %v427
        %820 = vmatpush1.msra.mxu0 %v426
        %821 = vmatprep.mubr.f32.mxu0 %v169
        %822 = vmatmul.mubr.f32.gmra.mrb[0].mxu0 %v168
        %v823 = vpop.f32.mrb[0].mxu0
        %v824 = vadd.f32 %v753, %v823
        %v825 = vpop.f32.mrb[0].mxu0
        %v826 = vadd.f32 %v755, %v825
        %827 = vdwg.mxu0
        %828 = vmatprep.subr.mxu0 %v431
        %829 = vmatpush1.msra.mxu0 %v430
        %830 = vmatprep.subr.mxu0 %v435
        %831 = vmatpush1.msra.mxu0 %v434
        %832 = vmatprep.subr.mxu0 %v439
        %833 = vmatpush1.msra.mxu0 %v438
        %834 = vmatprep.subr.mxu0 %v443
        %835 = vmatpush1.msra.mxu0 %v442
        %836 = vmatprep.subr.mxu0 %v447
        %837 = vmatpush1.msra.mxu0 %v446
        %838 = vmatprep.subr.mxu0 %v451
        %839 = vmatpush1.msra.mxu0 %v450
        %840 = vmatprep.subr.mxu0 %v455
        %841 = vmatpush1.msra.mxu0 %v454
        %842 = vmatprep.subr.mxu0 %v459
        %843 = vmatpush1.msra.mxu0 %v458
        %844 = vmatprep.subr.mxu0 %v463
        %845 = vmatpush1.msra.mxu0 %v462
        %846 = vmatprep.subr.mxu0 %v467
        %847 = vmatpush1.msra.mxu0 %v466
        %848 = vmatprep.subr.mxu0 %v471
        %849 = vmatpush1.msra.mxu0 %v470
        %850 = vmatprep.subr.mxu0 %v475
        %851 = vmatpush1.msra.mxu0 %v474
        %852 = vmatprep.subr.mxu0 %v479
        %853 = vmatpush1.msra.mxu0 %v478
        %854 = vmatprep.subr.mxu0 %v483
        %855 = vmatpush1.msra.mxu0 %v482
        %856 = vmatprep.subr.mxu0 %v487
        %857 = vmatpush1.msra.mxu0 %v486
        %858 = vmatprep.subr.mxu0 %v491
        %859 = vmatpush1.msra.mxu0 %v490
        %860 = vmatprep.subr.mxu0 %v495
        %861 = vmatpush1.msra.mxu0 %v494
        %862 = vmatprep.subr.mxu0 %v499
        %863 = vmatpush1.msra.mxu0 %v498
        %864 = vmatprep.subr.mxu0 %v503
        %865 = vmatpush1.msra.mxu0 %v502
        %866 = vmatprep.subr.mxu0 %v507
        %867 = vmatpush1.msra.mxu0 %v506
        %868 = vmatprep.subr.mxu0 %v511
        %869 = vmatpush1.msra.mxu0 %v510
        %870 = vmatprep.subr.mxu0 %v515
        %871 = vmatpush1.msra.mxu0 %v514
        %872 = vmatprep.subr.mxu0 %v519
        %873 = vmatpush1.msra.mxu0 %v518
        %874 = vmatprep.subr.mxu0 %v523
        %875 = vmatpush1.msra.mxu0 %v522
        %876 = vmatprep.subr.mxu0 %v527
        %877 = vmatpush1.msra.mxu0 %v526
        %878 = vmatprep.subr.mxu0 %v531
        %879 = vmatpush1.msra.mxu0 %v530
        %880 = vmatprep.subr.mxu0 %v535
        %881 = vmatpush1.msra.mxu0 %v534
        %882 = vmatprep.subr.mxu0 %v539
        %883 = vmatpush1.msra.mxu0 %v538
        %884 = vmatprep.subr.mxu0 %v543
        %885 = vmatpush1.msra.mxu0 %v542
        %886 = vmatprep.subr.mxu0 %v547
        %887 = vmatpush1.msra.mxu0 %v546
        %888 = vmatprep.subr.mxu0 %v551
        %889 = vmatpush1.msra.mxu0 %v550
        %890 = vmatprep.subr.mxu0 %v555
        %891 = vmatpush1.msra.mxu0 %v554
        %892 = vmatprep.mubr.f32.mxu0 %v171
        %893 = vmatmul.mubr.f32.gmra.mrb[0].mxu0 %v170
        %v894 = vpop.f32.mrb[0].mxu0
        %v895 = vadd.f32 %v824, %v894
        %v896 = vpop.f32.mrb[0].mxu0
        %v897 = vadd.f32 %v826, %v896
        %898 = vdwg.mxu0
        %899 = vmatprep.subr.mxu0 %v559
        %900 = vmatpush1.msra.mxu0 %v558
        %901 = vmatprep.subr.mxu0 %v563
        %902 = vmatpush1.msra.mxu0 %v562
        %903 = vmatprep.subr.mxu0 %v567
        %904 = vmatpush1.msra.mxu0 %v566
        %905 = vmatprep.subr.mxu0 %v571
        %906 = vmatpush1.msra.mxu0 %v570
        %907 = vmatprep.subr.mxu0 %v575
        %908 = vmatpush1.msra.mxu0 %v574
        %909 = vmatprep.subr.mxu0 %v579
        %910 = vmatpush1.msra.mxu0 %v578
        %911 = vmatprep.subr.mxu0 %v583
        %912 = vmatpush1.msra.mxu0 %v582
        %913 = vmatprep.subr.mxu0 %v587
        %914 = vmatpush1.msra.mxu0 %v586
        %915 = vmatprep.subr.mxu0 %v591
        %916 = vmatpush1.msra.mxu0 %v590
        %917 = vmatprep.subr.mxu0 %v595
        %918 = vmatpush1.msra.mxu0 %v594
        %919 = vmatprep.subr.mxu0 %v599
        %920 = vmatpush1.msra.mxu0 %v598
        %921 = vmatprep.subr.mxu0 %v603
        %922 = vmatpush1.msra.mxu0 %v602
        %923 = vmatprep.subr.mxu0 %v607
        %924 = vmatpush1.msra.mxu0 %v606
        %925 = vmatprep.subr.mxu0 %v611
        %926 = vmatpush1.msra.mxu0 %v610
        %927 = vmatprep.subr.mxu0 %v615
        %928 = vmatpush1.msra.mxu0 %v614
        %929 = vmatprep.subr.mxu0 %v619
        %930 = vmatpush1.msra.mxu0 %v618
        %931 = vmatprep.subr.mxu0 %v623
        %932 = vmatpush1.msra.mxu0 %v622
        %933 = vmatprep.subr.mxu0 %v627
        %934 = vmatpush1.msra.mxu0 %v626
        %935 = vmatprep.subr.mxu0 %v631
        %936 = vmatpush1.msra.mxu0 %v630
        %937 = vmatprep.subr.mxu0 %v635
        %938 = vmatpush1.msra.mxu0 %v634
        %939 = vmatprep.subr.mxu0 %v639
        %940 = vmatpush1.msra.mxu0 %v638
        %941 = vmatprep.subr.mxu0 %v643
        %942 = vmatpush1.msra.mxu0 %v642
        %943 = vmatprep.subr.mxu0 %v647
        %944 = vmatpush1.msra.mxu0 %v646
        %945 = vmatprep.subr.mxu0 %v651
        %946 = vmatpush1.msra.mxu0 %v650
        %947 = vmatprep.subr.mxu0 %v655
        %948 = vmatpush1.msra.mxu0 %v654
        %949 = vmatprep.subr.mxu0 %v659
        %950 = vmatpush1.msra.mxu0 %v658
        %951 = vmatprep.subr.mxu0 %v663
        %952 = vmatpush1.msra.mxu0 %v662
        %953 = vmatprep.subr.mxu0 %v667
        %954 = vmatpush1.msra.mxu0 %v666
        %955 = vmatprep.subr.mxu0 %v671
        %956 = vmatpush1.msra.mxu0 %v670
        %957 = vmatprep.subr.mxu0 %v675
        %958 = vmatpush1.msra.mxu0 %v674
        %959 = vmatprep.subr.mxu0 %v679
        %960 = vmatpush1.msra.mxu0 %v678
        %961 = vmatprep.subr.mxu0 %v683
        %962 = vmatpush1.msra.mxu0 %v682
        %963 = vmatprep.mubr.f32.mxu0 %v173
        %964 = vmatmul.mubr.f32.gmra.mrb[0].mxu0 %v172
        %v965 = vpop.f32.mrb[0].mxu0
        %v966 = vadd.f32 %v895, %v965
        %v967 = vpop.f32.mrb[0].mxu0
        %v968 = vadd.f32 %v897, %v967
        %969 = vdwg.mxu0
        %970 = vmatprep.subr.mxu0 %v177
        %971 = vmatpush1.msra.mxu0 %v176
        %972 = vmatprep.subr.mxu0 %v181
        %973 = vmatpush1.msra.mxu0 %v180
        %974 = vmatprep.subr.mxu0 %v185
        %975 = vmatpush1.msra.mxu0 %v184
        %976 = vmatprep.subr.mxu0 %v189
        %977 = vmatpush1.msra.mxu0 %v188
        %978 = vmatprep.subr.mxu0 %v193
        %979 = vmatpush1.msra.mxu0 %v192
        %980 = vmatprep.subr.mxu0 %v197
        %981 = vmatpush1.msra.mxu0 %v196
        %982 = vmatprep.subr.mxu0 %v201
        %983 = vmatpush1.msra.mxu0 %v200
        %984 = vmatprep.subr.mxu0 %v205
        %985 = vmatpush1.msra.mxu0 %v204
        %986 = vmatprep.subr.mxu0 %v209
        %987 = vmatpush1.msra.mxu0 %v208
        %988 = vmatprep.subr.mxu0 %v213
        %989 = vmatpush1.msra.mxu0 %v212
        %990 = vmatprep.subr.mxu0 %v217
        %991 = vmatpush1.msra.mxu0 %v216
        %992 = vmatprep.subr.mxu0 %v221
        %993 = vmatpush1.msra.mxu0 %v220
        %994 = vmatprep.subr.mxu0 %v225
        %995 = vmatpush1.msra.mxu0 %v224
        %996 = vmatprep.subr.mxu0 %v229
        %997 = vmatpush1.msra.mxu0 %v228
        %998 = vmatprep.subr.mxu0 %v233
        %999 = vmatpush1.msra.mxu0 %v232
        %1000 = vmatprep.subr.mxu0 %v237
        %1001 = vmatpush1.msra.mxu0 %v236
        %1002 = vmatprep.subr.mxu0 %v241
        %1003 = vmatpush1.msra.mxu0 %v240
        %1004 = vmatprep.subr.mxu0 %v245
        %1005 = vmatpush1.msra.mxu0 %v244
        %1006 = vmatprep.subr.mxu0 %v249
        %1007 = vmatpush1.msra.mxu0 %v248
        %1008 = vmatprep.subr.mxu0 %v253
        %1009 = vmatpush1.msra.mxu0 %v252
        %1010 = vmatprep.subr.mxu0 %v257
        %1011 = vmatpush1.msra.mxu0 %v256
        %1012 = vmatprep.subr.mxu0 %v261
        %1013 = vmatpush1.msra.mxu0 %v260
        %1014 = vmatprep.subr.mxu0 %v265
        %1015 = vmatpush1.msra.mxu0 %v264
        %1016 = vmatprep.subr.mxu0 %v269
        %1017 = vmatpush1.msra.mxu0 %v268
        %1018 = vmatprep.subr.mxu0 %v273
        %1019 = vmatpush1.msra.mxu0 %v272
        %1020 = vmatprep.subr.mxu0 %v277
        %1021 = vmatpush1.msra.mxu0 %v276
        %1022 = vmatprep.subr.mxu0 %v281
        %1023 = vmatpush1.msra.mxu0 %v280
        %1024 = vmatprep.subr.mxu0 %v285
        %1025 = vmatpush1.msra.mxu0 %v284
        %1026 = vmatprep.subr.mxu0 %v289
        %1027 = vmatpush1.msra.mxu0 %v288
        %1028 = vmatprep.subr.mxu0 %v293
        %1029 = vmatpush1.msra.mxu0 %v292
        %1030 = vmatprep.subr.mxu0 %v297
        %1031 = vmatpush1.msra.mxu0 %v296
        %1032 = vmatprep.subr.mxu0 %v301
        %1033 = vmatpush1.msra.mxu0 %v300
        %1034 = vmatprep.mubr.f32.mxu0 %v167
        %1035 = vmatmul.mubr.f32.gmra.mrb[0].mxu0 %v166
        %v1036 = vpop.f32.mrb[0].mxu0
        %v1037 = vadd.f32 0.0, %v1036
        %v1038 = vpop.f32.mrb[0].mxu0
        %v1039 = vadd.f32 0.0, %v1038
        %1040 = vdwg.mxu0
        %1041 = vmatprep.subr.mxu0 %v305
        %1042 = vmatpush1.msra.mxu0 %v304
        %1043 = vmatprep.subr.mxu0 %v309
        %1044 = vmatpush1.msra.mxu0 %v308
        %1045 = vmatprep.subr.mxu0 %v313
        %1046 = vmatpush1.msra.mxu0 %v312
        %1047 = vmatprep.subr.mxu0 %v317
        %1048 = vmatpush1.msra.mxu0 %v316
        %1049 = vmatprep.subr.mxu0 %v321
        %1050 = vmatpush1.msra.mxu0 %v320
        %1051 = vmatprep.subr.mxu0 %v325
        %1052 = vmatpush1.msra.mxu0 %v324
        %1053 = vmatprep.subr.mxu0 %v329
        %1054 = vmatpush1.msra.mxu0 %v328
        %1055 = vmatprep.subr.mxu0 %v333
        %1056 = vmatpush1.msra.mxu0 %v332
        %1057 = vmatprep.subr.mxu0 %v337
        %1058 = vmatpush1.msra.mxu0 %v336
        %1059 = vmatprep.subr.mxu0 %v341
        %1060 = vmatpush1.msra.mxu0 %v340
        %1061 = vmatprep.subr.mxu0 %v345
        %1062 = vmatpush1.msra.mxu0 %v344
        %1063 = vmatprep.subr.mxu0 %v349
        %1064 = vmatpush1.msra.mxu0 %v348
        %1065 = vmatprep.subr.mxu0 %v353
        %1066 = vmatpush1.msra.mxu0 %v352
        %1067 = vmatprep.subr.mxu0 %v357
        %1068 = vmatpush1.msra.mxu0 %v356
        %1069 = vmatprep.subr.mxu0 %v361
        %1070 = vmatpush1.msra.mxu0 %v360
        %1071 = vmatprep.subr.mxu0 %v365
        %1072 = vmatpush1.msra.mxu0 %v364
        %1073 = vmatprep.subr.mxu0 %v369
        %1074 = vmatpush1.msra.mxu0 %v368
        %1075 = vmatprep.subr.mxu0 %v373
        %1076 = vmatpush1.msra.mxu0 %v372
        %1077 = vmatprep.subr.mxu0 %v377
        %1078 = vmatpush1.msra.mxu0 %v376
        %1079 = vmatprep.subr.mxu0 %v381
        %1080 = vmatpush1.msra.mxu0 %v380
        %1081 = vmatprep.subr.mxu0 %v385
        %1082 = vmatpush1.msra.mxu0 %v384
        %1083 = vmatprep.subr.mxu0 %v389
        %1084 = vmatpush1.msra.mxu0 %v388
        %1085 = vmatprep.subr.mxu0 %v393
        %1086 = vmatpush1.msra.mxu0 %v392
        %1087 = vmatprep.subr.mxu0 %v397
        %1088 = vmatpush1.msra.mxu0 %v396
        %1089 = vmatprep.subr.mxu0 %v401
        %1090 = vmatpush1.msra.mxu0 %v400
        %1091 = vmatprep.subr.mxu0 %v405
        %1092 = vmatpush1.msra.mxu0 %v404
        %1093 = vmatprep.subr.mxu0 %v409
        %1094 = vmatpush1.msra.mxu0 %v408
        %1095 = vmatprep.subr.mxu0 %v413
        %1096 = vmatpush1.msra.mxu0 %v412
        %1097 = vmatprep.subr.mxu0 %v417
        %1098 = vmatpush1.msra.mxu0 %v416
        %1099 = vmatprep.subr.mxu0 %v421
        %1100 = vmatpush1.msra.mxu0 %v420
        %1101 = vmatprep.subr.mxu0 %v425
        %1102 = vmatpush1.msra.mxu0 %v424
        %1103 = vmatprep.subr.mxu0 %v429
        %1104 = vmatpush1.msra.mxu0 %v428
        %1105 = vmatprep.mubr.f32.mxu0 %v169
        %1106 = vmatmul.mubr.f32.gmra.mrb[0].mxu0 %v168
        %v1107 = vpop.f32.mrb[0].mxu0
        %v1108 = vadd.f32 %v1037, %v1107
        %v1109 = vpop.f32.mrb[0].mxu0
        %v1110 = vadd.f32 %v1039, %v1109
        %1111 = vdwg.mxu0
        %1112 = vmatprep.subr.mxu0 %v433
        %1113 = vmatpush1.msra.mxu0 %v432
        %1114 = vmatprep.subr.mxu0 %v437
        %1115 = vmatpush1.msra.mxu0 %v436
        %1116 = vmatprep.subr.mxu0 %v441
        %1117 = vmatpush1.msra.mxu0 %v440
        %1118 = vmatprep.subr.mxu0 %v445
        %1119 = vmatpush1.msra.mxu0 %v444
        %1120 = vmatprep.subr.mxu0 %v449
        %1121 = vmatpush1.msra.mxu0 %v448
        %1122 = vmatprep.subr.mxu0 %v453
        %1123 = vmatpush1.msra.mxu0 %v452
        %1124 = vmatprep.subr.mxu0 %v457
        %1125 = vmatpush1.msra.mxu0 %v456
        %1126 = vmatprep.subr.mxu0 %v461
        %1127 = vmatpush1.msra.mxu0 %v460
        %1128 = vmatprep.subr.mxu0 %v465
        %1129 = vmatpush1.msra.mxu0 %v464
        %1130 = vmatprep.subr.mxu0 %v469
        %1131 = vmatpush1.msra.mxu0 %v468
        %1132 = vmatprep.subr.mxu0 %v473
        %1133 = vmatpush1.msra.mxu0 %v472
        %1134 = vmatprep.subr.mxu0 %v477
        %1135 = vmatpush1.msra.mxu0 %v476
        %1136 = vmatprep.subr.mxu0 %v481
        %1137 = vmatpush1.msra.mxu0 %v480
        %1138 = vmatprep.subr.mxu0 %v485
        %1139 = vmatpush1.msra.mxu0 %v484
        %1140 = vmatprep.subr.mxu0 %v489
        %1141 = vmatpush1.msra.mxu0 %v488
        %1142 = vmatprep.subr.mxu0 %v493
        %1143 = vmatpush1.msra.mxu0 %v492
        %1144 = vmatprep.subr.mxu0 %v497
        %1145 = vmatpush1.msra.mxu0 %v496
        %1146 = vmatprep.subr.mxu0 %v501
        %1147 = vmatpush1.msra.mxu0 %v500
        %1148 = vmatprep.subr.mxu0 %v505
        %1149 = vmatpush1.msra.mxu0 %v504
        %1150 = vmatprep.subr.mxu0 %v509
        %1151 = vmatpush1.msra.mxu0 %v508
        %1152 = vmatprep.subr.mxu0 %v513
        %1153 = vmatpush1.msra.mxu0 %v512
        %1154 = vmatprep.subr.mxu0 %v517
        %1155 = vmatpush1.msra.mxu0 %v516
        %1156 = vmatprep.subr.mxu0 %v521
        %1157 = vmatpush1.msra.mxu0 %v520
        %1158 = vmatprep.subr.mxu0 %v525
        %1159 = vmatpush1.msra.mxu0 %v524
        %1160 = vmatprep.subr.mxu0 %v529
        %1161 = vmatpush1.msra.mxu0 %v528
        %1162 = vmatprep.subr.mxu0 %v533
        %1163 = vmatpush1.msra.mxu0 %v532
        %1164 = vmatprep.subr.mxu0 %v537
        %1165 = vmatpush1.msra.mxu0 %v536
        %1166 = vmatprep.subr.mxu0 %v541
        %1167 = vmatpush1.msra.mxu0 %v540
        %1168 = vmatprep.subr.mxu0 %v545
        %1169 = vmatpush1.msra.mxu0 %v544
        %1170 = vmatprep.subr.mxu0 %v549
        %1171 = vmatpush1.msra.mxu0 %v548
        %1172 = vmatprep.subr.mxu0 %v553
        %1173 = vmatpush1.msra.mxu0 %v552
        %1174 = vmatprep.subr.mxu0 %v557
        %1175 = vmatpush1.msra.mxu0 %v556
        %1176 = vmatprep.mubr.f32.mxu0 %v171
        %1177 = vmatmul.mubr.f32.gmra.mrb[0].mxu0 %v170
        %v1178 = vpop.f32.mrb[0].mxu0
        %v1179 = vadd.f32 %v1108, %v1178
        %v1180 = vpop.f32.mrb[0].mxu0
        %v1181 = vadd.f32 %v1110, %v1180
        %1182 = vdwg.mxu0
        %1183 = vmatprep.subr.mxu0 %v561
        %1184 = vmatpush1.msra.mxu0 %v560
        %1185 = vmatprep.subr.mxu0 %v565
        %1186 = vmatpush1.msra.mxu0 %v564
        %1187 = vmatprep.subr.mxu0 %v569
        %1188 = vmatpush1.msra.mxu0 %v568
        %1189 = vmatprep.subr.mxu0 %v573
        %1190 = vmatpush1.msra.mxu0 %v572
        %1191 = vmatprep.subr.mxu0 %v577
        %1192 = vmatpush1.msra.mxu0 %v576
        %1193 = vmatprep.subr.mxu0 %v581
        %1194 = vmatpush1.msra.mxu0 %v580
        %1195 = vmatprep.subr.mxu0 %v585
        %1196 = vmatpush1.msra.mxu0 %v584
        %1197 = vmatprep.subr.mxu0 %v589
        %1198 = vmatpush1.msra.mxu0 %v588
        %1199 = vmatprep.subr.mxu0 %v593
        %1200 = vmatpush1.msra.mxu0 %v592
        %1201 = vmatprep.subr.mxu0 %v597
        %1202 = vmatpush1.msra.mxu0 %v596
        %1203 = vmatprep.subr.mxu0 %v601
        %1204 = vmatpush1.msra.mxu0 %v600
        %1205 = vmatprep.subr.mxu0 %v605
        %1206 = vmatpush1.msra.mxu0 %v604
        %1207 = vmatprep.subr.mxu0 %v609
        %1208 = vmatpush1.msra.mxu0 %v608
        %1209 = vmatprep.subr.mxu0 %v613
        %1210 = vmatpush1.msra.mxu0 %v612
        %1211 = vmatprep.subr.mxu0 %v617
        %1212 = vmatpush1.msra.mxu0 %v616
        %1213 = vmatprep.subr.mxu0 %v621
        %1214 = vmatpush1.msra.mxu0 %v620
        %1215 = vmatprep.subr.mxu0 %v625
        %1216 = vmatpush1.msra.mxu0 %v624
        %1217 = vmatprep.subr.mxu0 %v629
        %1218 = vmatpush1.msra.mxu0 %v628
        %1219 = vmatprep.subr.mxu0 %v633
        %1220 = vmatpush1.msra.mxu0 %v632
        %1221 = vmatprep.subr.mxu0 %v637
        %1222 = vmatpush1.msra.mxu0 %v636
        %1223 = vmatprep.subr.mxu0 %v641
        %1224 = vmatpush1.msra.mxu0 %v640
        %1225 = vmatprep.subr.mxu0 %v645
        %1226 = vmatpush1.msra.mxu0 %v644
        %1227 = vmatprep.subr.mxu0 %v649
        %1228 = vmatpush1.msra.mxu0 %v648
        %1229 = vmatprep.subr.mxu0 %v653
        %1230 = vmatpush1.msra.mxu0 %v652
        %1231 = vmatprep.subr.mxu0 %v657
        %1232 = vmatpush1.msra.mxu0 %v656
        %1233 = vmatprep.subr.mxu0 %v661
        %1234 = vmatpush1.msra.mxu0 %v660
        %1235 = vmatprep.subr.mxu0 %v665
        %1236 = vmatpush1.msra.mxu0 %v664
        %1237 = vmatprep.subr.mxu0 %v669
        %1238 = vmatpush1.msra.mxu0 %v668
        %1239 = vmatprep.subr.mxu0 %v673
        %1240 = vmatpush1.msra.mxu0 %v672
        %1241 = vmatprep.subr.mxu0 %v677
        %1242 = vmatpush1.msra.mxu0 %v676
        %1243 = vmatprep.subr.mxu0 %v681
        %1244 = vmatpush1.msra.mxu0 %v680
        %1245 = vmatprep.subr.mxu0 %v685
        %1246 = vmatpush1.msra.mxu0 %v684
        %1247 = vmatprep.mubr.f32.mxu0 %v173
        %1248 = vmatmul.mubr.f32.gmra.mrb[0].mxu0 %v172
        %v1249 = vpop.f32.mrb[0].mxu0
        %v1250 = vadd.f32 %v1179, %v1249
        %v1251 = vpop.f32.mrb[0].mxu0
        %v1252 = vadd.f32 %v1181, %v1251
        %1253 = vdwg.mxu0
        %1254 = vst [vmem:[%s164] sm:$0xff] %v966
        %1255 = vst [vmem:[%s164 + $0x8] sm:$0xff] %v968
        %1256 = vst [vmem:[%s164 + $0x10] sm:$0xff] %v1250
        %1257 = vst [vmem:[%s164 + $0x18] sm:$0xff] %v1252
        %s1258 = smul.u32 4, %s16
        %p1259 = scmp.lt.s32.totalorder %s1258, 7
        %s1260 = scalar_select %p1259, %s1258, 7
        %s1261 = smul.addr %s1260, 8
        %s1262 = scalar_lea.vmem %s2, %s1261
        // Predicated region
        $region33: #{pa_forward.1} parent=27 // pred_check
          %p1263 = pneg %p81
        $region34: #{pa_forward.1} parent=27 // pred_check_branch
          %1265 = sbr.rel (%p1263) target = $region36
        $region35: #{pa_forward.1} parent=27 // pred_region
          %s1266 = smul.u32 4, %s16
        $region36: #{pa_forward.1} parent=27 // pred_fallthru
          _
      $region28: #{pa_forward.1} parent=5 // pred_fallthru
        _
      %p1267 = scmp.le.s32.totalorder 2, %s11
      // Predicated region
      $region37: #{pa_forward.1} parent=5 // pred_check
        %p1268 = pneg %p1267
      $region38: #{pa_forward.1} parent=5 // pred_check_branch
        %1270 = sbr.rel (%p1268) target = $region40
      $region39: #{pa_forward.1} parent=5 // pred_region
        %s1271 = ssub.s32 %s11, 2
        // Predicated region
        $region41: #{pa_forward.1} parent=39 // pred_check
          %p1272 = pneg %p87
        $region42: #{pa_forward.1} parent=39 // pred_check_branch
          %1274 = sbr.rel (%p1272) target = $region44
        $region43: #{pa_forward.1} parent=39 // pred_region
          %s1275 = smul.u32 4, %s17
          %p1276 = scmp.lt.s32.totalorder %s1275, 7
          %s1277 = scalar_select %p1276, %s1275, 7
          %s1278 = smul.addr %s1277, 8
          %s1279 = scalar_lea.vmem %s2, %s1278
        $region44: #{pa_forward.1} parent=39 // pred_fallthru
          _
      $region40: #{pa_forward.1} parent=5 // pred_fallthru
        _
    $region6: #{pa_forward.1} parent=1 // loop_footer
      %s15 = sadd.s32 1, %s11
    $region7: #{pa_forward.1} parent=1 // loop_footer_branch
      %10 = sbr.rel target = $region3
    $region8: #{pa_forward.1} parent=1 // loop_exit
      _
    %1280 = vsyncpa [#allocation3], 1
    %s1281 = scalar_lea.sflag [#allocation3], 1
    %1282 = vsyncpa %s1281, 1

</llo_original>
